<compile_context>
chip_gen: v7x
topology: tpu7x:2x2x1
jax: 0.10.0
libtpu: 0.0.40
codegen_flags: <defaults>
</compile_context>

<pallas_src>
import numpy as np
import jax
import jax.numpy as jnp
from jax.experimental import pallas as pl
from jax.experimental.pallas import tpu as pltpu

VMEM_LIMIT = 32 * 1024 * 1024  # safe on v5e/v6e (128 MiB) and v7x (64 MiB physical)


# ----------------------------------------------------------------------------
# helpers
# ----------------------------------------------------------------------------
def _sigmoid(x):
    return 1.0 / (1.0 + jnp.exp(-x))


def _pick_row_block(n, cap=512):
    """Largest multiple-of-8 divisor of n that is <= cap and (if possible) < n,
    so that >=2 'parallel' grid steps exist for megacore sharding on v7x."""
    if n <= 8 or n % 8 != 0:
        return n
    candidates = [d for d in range(8, min(n, cap) + 1, 8) if n % d == 0]
    proper = [d for d in candidates if d < n]
    pool = proper if proper else candidates
    return max(pool) if pool else n


def _grn_compute(x, wcat, bcat, w2, misc, dh, dout, ctx=None, wctx=None):
    """Packed GRN: wcat=[w1|wg|wskip], bcat=[b1(+bctx)|bg|bskip], misc=[b2;ln_w;ln_b]."""
    pre = jnp.dot(x, wcat, preferred_element_type=jnp.float32) + bcat
    hidden = pre[:, :dh]
    gate_pre = pre[:, dh:dh + dout]
    residual = pre[:, dh + dout:dh + 2 * dout]
    if ctx is not None:
        hidden = hidden + jnp.dot(ctx, wctx, preferred_element_type=jnp.float32)
    # ELU (alpha=1)
    hidden = jnp.where(hidden > 0, hidden, jnp.exp(hidden) - 1.0)
    hidden = jnp.dot(hidden, w2, preferred_element_type=jnp.float32) + misc[0:1, :]
    gate = _sigmoid(gate_pre)
    gated = gate * hidden + (1.0 - gate) * residual
    mu = jnp.mean(gated, axis=-1, keepdims=True)
    var = jnp.mean((gated - mu) ** 2, axis=-1, keepdims=True)
    return (gated - mu) * jax.lax.rsqrt(var + 1e-5) * misc[1:2, :] + misc[2:3, :]


# ----------------------------------------------------------------------------
# Fused Variable Selection Network (per-feature GRNs + selection GRN + softmax mix)
# ----------------------------------------------------------------------------
def vsn_apply(x_dict, p, order, context=None):
    names = list(order)
    nf = len(names)
    H = p["hidden"]
    dmax = p["dmax"]
    sel = p["sel"]

    x_first = x_dict[names[0]]
    lead = x_first.shape[:-1]
    N = int(np.prod(lead))

    # Stack zero-padded per-feature inputs -> [nf, N, dmax]
    feats = []
    for name in names:
        xi = x_dict[name].reshape(N, x_dict[name].shape[-1])
        d = xi.shape[-1]
        if d < dmax:
            xi = jnp.pad(xi, ((0, 0), (0, dmax - d)))
        feats.append(xi)
    xf = jnp.stack(feats, axis=0)

    xc = jnp.concatenate(
        [x_dict[n].reshape(N, x_dict[n].shape[-1]) for n in names], axis=-1)
    Dcat = xc.shape[-1]

    has_ctx = (context is not None) and ("wctx" in sel)
    if has_ctx:
        if len(lead) == 2:
            ctx2 = jnp.broadcast_to(
                context[:, None, :], lead + (context.shape[-1],)
            ).reshape(N, context.shape[-1])
        else:
            ctx2 = context.reshape(N, context.shape[-1])

    rb = _pick_row_block(N)
    grid = (N // rb,)

    def kernel(*refs):
        i = 0
        xf_r = refs[i]; i += 1
        xc_r = refs[i]; i += 1
        if has_ctx:
            ctx_r = refs[i]; i += 1
        fw_r, fb_r, fw2_r, fm_r = refs[i:i + 4]; i += 4
        sw_r, sb_r, sw2_r, sm_r = refs[i:i + 4]; i += 4
        if has_ctx:
            swc_r = refs[i]; i += 1
        comb_r, raw_r = refs[i], refs[i + 1]

        ctx_v = ctx_r[...] if has_ctx else None
        wctx_v = swc_r[...] if has_ctx else None
        sel_raw = _grn_compute(xc_r[...], sw_r[...], sb_r[...], sw2_r[...],
                               sm_r[...], H, nf, ctx=ctx_v, wctx=wctx_v)
        raw_r[...] = sel_raw

        m = jnp.max(sel_raw, axis=-1, keepdims=True)
        e = jnp.exp(sel_raw - m)
        w = e * pl.reciprocal(jnp.sum(e, axis=-1, keepdims=True), approx=True)

        acc = jnp.zeros((rb, H), jnp.float32)
        for f in range(nf):
            t_f = _grn_compute(xf_r[f], fw_r[f], fb_r[f], fw2_r[f], fm_r[f], H, H)
            acc = acc + w[:, f:f + 1] * t_f
        comb_r[...] = acc

    inputs = [xf, xc]
    in_specs = [
        pl.BlockSpec((nf, rb, dmax), lambda i: (0, i, 0)),
        pl.BlockSpec((rb, Dcat), lambda i: (i, 0)),
    ]
    if has_ctx:
        inputs.append(ctx2)
        in_specs.append(pl.BlockSpec((rb, ctx2.shape[-1]), lambda i: (i, 0)))
    inputs += [p["f_wcat"], p["f_bcat"], p["f_w2"], p["f_misc"],
               sel["wcat"], sel["bcat"], sel["w2"], sel["misc"]]
    in_specs += [
        pl.BlockSpec(p["f_wcat"].shape, lambda i: (0, 0, 0)),
        pl.BlockSpec(p["f_bcat"].shape, lambda i: (0, 0, 0)),
        pl.BlockSpec(p["f_w2"].shape, lambda i: (0, 0, 0)),
        pl.BlockSpec(p["f_misc"].shape, lambda i: (0, 0, 0)),
        pl.BlockSpec(sel["wcat"].shape, lambda i: (0, 0)),
        pl.BlockSpec(sel["bcat"].shape, lambda i: (0, 0)),
        pl.BlockSpec(sel["w2"].shape, lambda i: (0, 0)),
        pl.BlockSpec(sel["misc"].shape, lambda i: (0, 0)),
    ]
    if has_ctx:
        inputs.append(sel["wctx"])
        in_specs.append(pl.BlockSpec(sel["wctx"].shape, lambda i: (0, 0)))

    comb, raw = pl.pallas_call(
        kernel,
        grid=grid,
        in_specs=in_specs,
        out_specs=[pl.BlockSpec((rb, H), lambda i: (i, 0)),
                   pl.BlockSpec((rb, nf), lambda i: (i, 0))],
        out_shape=[jax.ShapeDtypeStruct((N, H), jnp.float32),
                   jax.ShapeDtypeStruct((N, nf), jnp.float32)],
        compiler_params=pltpu.CompilerParams(
            dimension_semantics=("parallel",), vmem_limit_bytes=VMEM_LIMIT),
    )(*inputs)
    return comb.reshape(lead + (H,)), raw.reshape(lead + (nf,))


# ----------------------------------------------------------------------------
# n GRNs with the same [N, H] input fused into one kernel (static contexts)
# ----------------------------------------------------------------------------
def multi_grn_apply(x2, p):
    n = p["wcat"].shape[0]
    N, Din = x2.shape
    dh = p["dh"]
    dout = p["misc"].shape[-1]

    def kernel(x_r, w_r, b_r, w2_r, m_r, o_r):
        o_r[0] = _grn_compute(x_r[...], w_r[0], b_r[0], w2_r[0], m_r[0], dh, dout)

    return pl.pallas_call(
        kernel,
        grid=(n,),
        in_specs=[
            pl.BlockSpec((N, Din), lambda g: (0, 0)),
            pl.BlockSpec((1,) + p["wcat"].shape[1:], lambda g: (g, 0, 0)),
            pl.BlockSpec((1,) + p["bcat"].shape[1:], lambda g: (g, 0, 0)),
            pl.BlockSpec((1,) + p["w2"].shape[1:], lambda g: (g, 0, 0)),
            pl.BlockSpec((1,) + p["misc"].shape[1:], lambda g: (g, 0, 0)),
        ],
        out_specs=pl.BlockSpec((1, N, dout), lambda g: (g, 0, 0)),
        out_shape=jax.ShapeDtypeStruct((n, N, dout), jnp.float32),
        compiler_params=pltpu.CompilerParams(
            dimension_semantics=("parallel",), vmem_limit_bytes=VMEM_LIMIT),
    )(x2, p["wcat"], p["bcat"], p["w2"], p["misc"])


# ----------------------------------------------------------------------------
# LSTM (single layer, batch_first) — ONE kernel invocation, in-kernel time loop
# ----------------------------------------------------------------------------
def lstm_apply(x_seq, h0, c0, p):
    """x_seq: [B, T, H]; h0, c0: [B, H]. Returns (out_seq [B,T,H], h_T, c_T)."""
    B, T, H = x_seq.shape
    xt = jnp.transpose(x_seq, (1, 0, 2))  # time-major [T, B, H]

    def kernel(x_ref, h0_ref, c0_ref, w_ref, b_ref, out_ref, hf_ref, cf_ref):
        # per-gate (2H, H) weights — gate outputs stay lane-aligned (no 32-lane
        # sub-slices of a 128-lane gate vector).
        w_i, w_f, w_g, w_o = w_ref[0], w_ref[1], w_ref[2], w_ref[3]
        b_i, b_f, b_g, b_o = b_ref[0], b_ref[1], b_ref[2], b_ref[3]

        def step(t, carry):
            h, c = carry
            xh = jnp.concatenate([x_ref[t], h], axis=-1)          # (B, 2H)
            i_g = _sigmoid(jnp.dot(xh, w_i, preferred_element_type=jnp.float32) + b_i)
            f_g = _sigmoid(jnp.dot(xh, w_f, preferred_element_type=jnp.float32) + b_f)
            g_g = jnp.tanh(jnp.dot(xh, w_g, preferred_element_type=jnp.float32) + b_g)
            o_g = _sigmoid(jnp.dot(xh, w_o, preferred_element_type=jnp.float32) + b_o)
            c_new = f_g * c + i_g * g_g
            h_new = o_g * jnp.tanh(c_new)
            out_ref[t] = h_new
            return (h_new, c_new)

        h_T, c_T = jax.lax.fori_loop(0, T, step, (h0_ref[...], c0_ref[...]),
                                     unroll=True)
        hf_ref[...] = h_T
        cf_ref[...] = c_T

    out_seq, hf, cf = pl.pallas_call(
        kernel,
        out_shape=[
            jax.ShapeDtypeStruct((T, B, H), jnp.float32),
            jax.ShapeDtypeStruct((B, H), jnp.float32),
            jax.ShapeDtypeStruct((B, H), jnp.float32),
        ],
        compiler_params=pltpu.CompilerParams(vmem_limit_bytes=VMEM_LIMIT),
    )(xt, h0, c0, p["wstack"], p["bstack"])
    return jnp.transpose(out_seq, (1, 0, 2)), hf, cf


# ----------------------------------------------------------------------------
# Interpretable multi-head attention — grid over batch, per-head weight slices
# ----------------------------------------------------------------------------
def mha_apply(query, key, value, p, n_heads):
    B, Tq, D = query.shape
    Tk = key.shape[1]
    dk = D // n_heads
    inv_scale = float(1.0 / np.sqrt(dk))

    def kernel(q_ref, k_ref, v_ref, wq_r, bq_r, wk_r, bk_r, wv_r, bv_r,
               wo_r, bo_r, out_ref, attn_ref):
        q = q_ref[0]
        k = k_ref[0]
        v = v_ref[0]
        acc = jnp.zeros((Tq, D), jnp.float32)
        attn_parts = []
        for h in range(n_heads):
            Qh = jnp.dot(q, wq_r[h], preferred_element_type=jnp.float32) + bq_r[h]
            Kh = jnp.dot(k, wk_r[h], preferred_element_type=jnp.float32) + bk_r[h]
            Vh = jnp.dot(v, wv_r[h], preferred_element_type=jnp.float32) + bv_r[h]
            s = jax.lax.dot_general(Qh, Kh, (((1,), (1,)), ((), ())),
                                    preferred_element_type=jnp.float32) * inv_scale
            m = jnp.max(s, axis=-1, keepdims=True)
            e = jnp.exp(s - m)
            pw = e * pl.reciprocal(jnp.sum(e, axis=-1, keepdims=True), approx=True)
            attn_parts.append(pw)
            ctx_h = jnp.dot(pw, Vh, preferred_element_type=jnp.float32)
            acc = acc + jnp.dot(ctx_h, wo_r[h], preferred_element_type=jnp.float32)
        out_ref[0] = acc + bo_r[...]
        attn_ref[0] = jnp.concatenate(attn_parts, axis=-1)   # lane-dense [Tq, heads*Tk]

    out, attn = pl.pallas_call(
        kernel,
        grid=(B,),
        in_specs=[
            pl.BlockSpec((1, Tq, D), lambda b: (b, 0, 0)),
            pl.BlockSpec((1, Tk, D), lambda b: (b, 0, 0)),
            pl.BlockSpec((1, Tk, D), lambda b: (b, 0, 0)),
            pl.BlockSpec(p["wq_h"].shape, lambda b: (0, 0, 0)),
            pl.BlockSpec(p["bq_h"].shape, lambda b: (0, 0, 0)),
            pl.BlockSpec(p["wk_h"].shape, lambda b: (0, 0, 0)),
            pl.BlockSpec(p["bk_h"].shape, lambda b: (0, 0, 0)),
            pl.BlockSpec(p["wv_h"].shape, lambda b: (0, 0, 0)),
            pl.BlockSpec(p["bv_h"].shape, lambda b: (0, 0, 0)),
            pl.BlockSpec(p["wo_h"].shape, lambda b: (0, 0, 0)),
            pl.BlockSpec(p["bo"].shape, lambda b: (0, 0)),
        ],
        out_specs=[
            pl.BlockSpec((1, Tq, D), lambda b: (b, 0, 0)),
            pl.BlockSpec((1, Tq, n_heads * Tk), lambda b: (b, 0, 0)),
        ],
        out_shape=[
            jax.ShapeDtypeStruct((B, Tq, D), jnp.float32),
            jax.ShapeDtypeStruct((B, Tq, n_heads * Tk), jnp.float32),
        ],
        compiler_params=pltpu.CompilerParams(
            dimension_semantics=("parallel",), vmem_limit_bytes=VMEM_LIMIT),
    )(query, key, value, p["wq_h"], p["bq_h"], p["wk_h"], p["bk_h"],
      p["wv_h"], p["bv_h"], p["wo_h"], p["bo"])
    attn4 = attn.reshape(B, Tq, n_heads, Tk).transpose(0, 2, 1, 3)
    return out, attn4


# ----------------------------------------------------------------------------
# Fused post-attention chain: GRN -> GRN -> GRN -> output Linear
# ----------------------------------------------------------------------------
def post_output_apply(y2, p, out_w, out_b):
    N, H = y2.shape
    n_out = out_w.shape[1]
    dh = p["dh"]
    rb = _pick_row_block(N)

    def kernel(y_r, w_r, b_r, w2_r, m_r, ow_r, ob_r, o_r):
        y = y_r[...]
        post = _grn_compute(y, w_r[0], b_r[0], w2_r[0], m_r[0], dh, H)
        ff = _grn_compute(post, w_r[1], b_r[1], w2_r[1], m_r[1], dh, H)
        pre = _grn_compute(ff + post, w_r[2], b_r[2], w2_r[2], m_r[2], dh, H)
        o_r[...] = jnp.dot(pre, ow_r[...], preferred_element_type=jnp.float32) + ob_r[...]

    return pl.pallas_call(
        kernel,
        grid=(N // rb,),
        in_specs=[
            pl.BlockSpec((rb, H), lambda i: (i, 0)),
            pl.BlockSpec(p["wcat"].shape, lambda i: (0, 0, 0)),
            pl.BlockSpec(p["bcat"].shape, lambda i: (0, 0, 0)),
            pl.BlockSpec(p["w2"].shape, lambda i: (0, 0, 0)),
            pl.BlockSpec(p["misc"].shape, lambda i: (0, 0, 0)),
            pl.BlockSpec(out_w.shape, lambda i: (0, 0)),
            pl.BlockSpec(out_b.shape, lambda i: (0, 0)),
        ],
        out_specs=pl.BlockSpec((rb, n_out), lambda i: (i, 0)),
        out_shape=jax.ShapeDtypeStruct((N, n_out), jnp.float32),
        compiler_params=pltpu.CompilerParams(
            dimension_semantics=("parallel",), vmem_limit_bytes=VMEM_LIMIT),
    )(y2, p["wcat"], p["bcat"], p["w2"], p["misc"], out_w, out_b)


# ----------------------------------------------------------------------------
# parameter init (deterministic, PyTorch-Linear-like uniform bounds) + packing
# ----------------------------------------------------------------------------
class KeyGen:
    def __init__(self, key):
        self.key = key

    def __call__(self):
        self.key, sub = jax.random.split(self.key)
        return sub


def init_linear(kg, din, dout):
    bound = 1.0 / np.sqrt(din)
    w = jax.random.uniform(kg(), (din, dout), jnp.float32, -bound, bound)
    b = jax.random.uniform(kg(), (dout,), jnp.float32, -bound, bound)
    return w, b


def init_grn_packed(kg, din, dhid, dout, dctx=None):
    w1, b1 = init_linear(kg, din, dhid)
    w2, b2 = init_linear(kg, dhid, dout)
    wg, bg = init_linear(kg, din, dout)
    if din != dout:
        wskip, bskip = init_linear(kg, din, dout)
    else:
        wskip = jnp.eye(din, dtype=jnp.float32)          # identity skip == residual = x
        bskip = jnp.zeros((dout,), jnp.float32)
    p = {"dh": dhid, "dout": dout}
    if dctx is not None:
        wctx, bctx = init_linear(kg, dctx, dhid)
        b1 = b1 + bctx                                   # fold ctx-proj bias into b1
        p["wctx"] = wctx
    p["wcat"] = jnp.concatenate([w1, wg, wskip], axis=1)           # (din, dhid+2*dout)
    p["bcat"] = jnp.concatenate([b1, bg, bskip])[None, :]          # (1, dhid+2*dout)
    p["w2"] = w2
    p["misc"] = jnp.stack([b2, jnp.ones((dout,), jnp.float32),
                           jnp.zeros((dout,), jnp.float32)], axis=0)  # [b2; ln_w; ln_b]
    return p


def init_vsn_packed(kg, input_dims, hidden, output_dim, ctx_dim=None):
    names = list(input_dims.keys())
    dmax = max(input_dims.values())
    f_wcat, f_bcat, f_w2, f_misc = [], [], [], []
    for name in names:
        d = input_dims[name]
        g = init_grn_packed(kg, d, hidden, output_dim)
        wc = g["wcat"]
        if d < dmax:
            wc = jnp.pad(wc, ((0, dmax - d), (0, 0)))    # zero rows for padded inputs
        f_wcat.append(wc)
        f_bcat.append(g["bcat"])
        f_w2.append(g["w2"])
        f_misc.append(g["misc"])
    sel = init_grn_packed(kg, sum(input_dims.values()), hidden, len(names), dctx=ctx_dim)
    return {
        "f_wcat": jnp.stack(f_wcat), "f_bcat": jnp.stack(f_bcat),
        "f_w2": jnp.stack(f_w2), "f_misc": jnp.stack(f_misc),
        "sel": sel, "dmax": dmax, "hidden": hidden, "names": names,
    }


def init_multi_grn_packed(kg, n, din, dhid, dout):
    gs = [init_grn_packed(kg, din, dhid, dout) for _ in range(n)]
    return {
        "wcat": jnp.stack([g["wcat"] for g in gs]),
        "bcat": jnp.stack([g["bcat"] for g in gs]),
        "w2": jnp.stack([g["w2"] for g in gs]),
        "misc": jnp.stack([g["misc"] for g in gs]),
        "dh": dhid,
    }


def init_lstm_packed(kg, H):
    # TODO(synk): PyTorch LSTM has b_ih + b_hh; a single combined bias is used here.
    bound = 1.0 / np.sqrt(H)
    wih = jax.random.uniform(kg(), (H, 4 * H), jnp.float32, -bound, bound)
    whh = jax.random.uniform(kg(), (H, 4 * H), jnp.float32, -bound, bound)
    b = jax.random.uniform(kg(), (4 * H,), jnp.float32, -bound, bound)
    w_comb = jnp.concatenate([wih, whh], axis=0)                              # (2H, 4H)
    wstack = jnp.stack([w_comb[:, g * H:(g + 1) * H] for g in range(4)], 0)   # (4, 2H, H)
    bstack = jnp.stack([b[g * H:(g + 1) * H][None, :] for g in range(4)], 0)  # (4, 1, H)
    return {"wstack": wstack, "bstack": bstack}


def init_mha_packed(kg, D, n_heads):
    dk = D // n_heads
    p = {}
    for nme in ("q", "k", "v"):
        w, b = init_linear(kg, D, D)
        p["w%s_h" % nme] = jnp.transpose(w.reshape(D, n_heads, dk), (1, 0, 2))  # (h, D, dk)
        p["b%s_h" % nme] = b.reshape(n_heads, dk)[:, None, :]                   # (h, 1, dk)
    wo, bo = init_linear(kg, D, D)
    p["wo_h"] = wo.reshape(n_heads, dk, D)                                      # (h, dk, D)
    p["bo"] = bo[None, :]
    return p


def init_tft_params(seed, cfg):
    kg = KeyGen(jax.random.PRNGKey(seed))
    H = cfg["hidden_dim"]
    params = {}
    params["static_vsn"] = init_vsn_packed(kg, cfg["static_dims"], H, H)
    params["static_ctx"] = init_multi_grn_packed(kg, 4, H, H, H)  # cs, ce, ch, cc
    params["encoder_vsn"] = init_vsn_packed(kg, cfg["encoder_dims"], H, H, ctx_dim=H)
    params["decoder_vsn"] = init_vsn_packed(kg, cfg["decoder_dims"], H, H, ctx_dim=H)
    params["lstm_encoder"] = init_lstm_packed(kg, H)
    params["lstm_decoder"] = init_lstm_packed(kg, H)
    params["attention"] = init_mha_packed(kg, H, cfg["attn_heads"])
    params["post_chain"] = init_multi_grn_packed(kg, 3, H, H, H)  # gate, ff, pre_output
    out_w, out_b = init_linear(kg, H, cfg["num_outputs"])
    params["out_w"] = out_w
    params["out_b"] = out_b[None, :]
    return params


# ----------------------------------------------------------------------------
# full TFT forward
# ----------------------------------------------------------------------------
def tft_forward(params, x, cfg):
    interp = {}
    H = cfg["hidden_dim"]

    # static covariate encoders (fused VSN + fused 4-way context GRNs)
    static_emb, static_raw = vsn_apply(x["static_inputs"], params["static_vsn"],
                                       cfg["static_order"])
    interp["static_var_weights"] = jax.nn.softmax(static_raw, axis=-1)
    ctx4 = multi_grn_apply(static_emb, params["static_ctx"])   # (4, B, H)
    cs, ce, ch, cc = ctx4[0], ctx4[1], ctx4[2], ctx4[3]

    # encoder / decoder variable selection
    enc_inputs = {}
    enc_inputs.update(x["encoder_known_categoricals"])
    enc_inputs.update(x["encoder_known_reals"])
    enc_inputs.update(x["encoder_observed_categoricals"])
    enc_inputs.update(x["encoder_observed_reals"])
    enc_vsn_out, enc_raw = vsn_apply(enc_inputs, params["encoder_vsn"],
                                     cfg["encoder_order"], context=cs)
    interp["encoder_var_weights"] = jax.nn.softmax(enc_raw, axis=-1)

    dec_inputs = {}
    dec_inputs.update(x["decoder_known_categoricals"])
    dec_inputs.update(x["decoder_known_reals"])
    dec_vsn_out, dec_raw = vsn_apply(dec_inputs, params["decoder_vsn"],
                                     cfg["decoder_order"], context=cs)
    interp["decoder_var_weights"] = jax.nn.softmax(dec_raw, axis=-1)

    # sequence-to-sequence LSTM (one kernel per direction, in-kernel time loop)
    enc_lstm_out, enc_h, enc_c = lstm_apply(enc_vsn_out, ch, cc, params["lstm_encoder"])
    dec_lstm_out, _, _ = lstm_apply(dec_vsn_out, enc_h, enc_c, params["lstm_decoder"])

    # static enrichment
    enrich = ce[:, None, :]
    enc_enriched = enc_lstm_out + enrich
    dec_enriched = dec_lstm_out + enrich
    full_ctx = jnp.concatenate([enc_enriched, dec_enriched], axis=1)

    # interpretable multi-head attention
    attn_out, attn_w = mha_apply(dec_enriched, full_ctx, full_ctx,
                                 params["attention"], cfg["attn_heads"])
    interp["attention_weights"] = attn_w

    # fused post-attention GRN chain + output Linear
    B, Td, _ = attn_out.shape
    post_in = (attn_out + dec_enriched).reshape(B * Td, H)
    preds = post_output_apply(post_in, params["post_chain"],
                              params["out_w"], params["out_b"])
    preds = preds.reshape(B, Td, cfg["num_outputs"])
    return preds, interp


# ----------------------------------------------------------------------------
# main
# ----------------------------------------------------------------------------
if __name__ == "__main__":
    B = 2
    T_ENC = 8
    T_DEC = 4
    H = 32
    HEADS = 4
    NUM_OUT = 1

    static_dims = {"stat_a": 3, "stat_b": 2}
    known_cat_dims = {"kcat": 2}
    known_real_dims = {"kreal": 1}
    obs_cat_dims = {"ocat": 2}
    obs_real_dims = {"oreal": 1}

    encoder_dims = {**known_cat_dims, **known_real_dims, **obs_cat_dims, **obs_real_dims}
    decoder_dims = {**known_cat_dims, **known_real_dims}

    cfg = {
        "hidden_dim": H,
        "attn_heads": HEADS,
        "num_outputs": NUM_OUT,
        "static_dims": static_dims,
        "encoder_dims": encoder_dims,
        "decoder_dims": decoder_dims,
        "static_order": list(static_dims.keys()),
        "encoder_order": list(encoder_dims.keys()),
        "decoder_order": list(decoder_dims.keys()),
    }

    params = init_tft_params(seed=0, cfg=cfg)

    kg = KeyGen(jax.random.PRNGKey(0))
    x = {
        "static_inputs": {
            name: jax.random.normal(kg(), (B, d), jnp.float32)
            for name, d in static_dims.items()
        },
        "encoder_known_categoricals": {
            name: jax.random.normal(kg(), (B, T_ENC, d), jnp.float32)
            for name, d in known_cat_dims.items()
        },
        "encoder_known_reals": {
            name: jax.random.normal(kg(), (B, T_ENC, d), jnp.float32)
            for name, d in known_real_dims.items()
        },
        "encoder_observed_categoricals": {
            name: jax.random.normal(kg(), (B, T_ENC, d), jnp.float32)
            for name, d in obs_cat_dims.items()
        },
        "encoder_observed_reals": {
            name: jax.random.normal(kg(), (B, T_ENC, d), jnp.float32)
            for name, d in obs_real_dims.items()
        },
        "decoder_known_categoricals": {
            name: jax.random.normal(kg(), (B, T_DEC, d), jnp.float32)
            for name, d in known_cat_dims.items()
        },
        "decoder_known_reals": {
            name: jax.random.normal(kg(), (B, T_DEC, d), jnp.float32)
            for name, d in known_real_dims.items()
        },
    }

    preds, interp = tft_forward(params, x, cfg)
    preds = jax.block_until_ready(preds)
    jax.block_until_ready(interp["attention_weights"])

    assert preds.shape == (B, T_DEC, NUM_OUT)
    assert interp["attention_weights"].shape == (B, HEADS, T_DEC, T_ENC + T_DEC)
    assert interp["static_var_weights"].shape == (B, len(static_dims))
    assert interp["encoder_var_weights"].shape == (B, T_ENC, len(encoder_dims))
    assert interp["decoder_var_weights"].shape == (B, T_DEC, len(decoder_dims))
    assert bool(jnp.all(jnp.isfinite(preds)))
    print("KERNEL_OK")
</pallas_src>

<mosaic_0001>
module attributes {stable_mosaic.version = 11 : i64} {
  func.func @kernel(%arg0: i32, %arg1: memref<2x2x3xf32, #tpu.memory_space<vmem>>, %arg2: memref<2x5xf32, #tpu.memory_space<vmem>>, %arg3: memref<2x3x96xf32, #tpu.memory_space<vmem>>, %arg4: memref<2x1x96xf32, #tpu.memory_space<vmem>>, %arg5: memref<2x32x32xf32, #tpu.memory_space<vmem>>, %arg6: memref<2x3x32xf32, #tpu.memory_space<vmem>>, %arg7: memref<5x36xf32, #tpu.memory_space<vmem>>, %arg8: memref<1x36xf32, #tpu.memory_space<vmem>>, %arg9: memref<32x2xf32, #tpu.memory_space<vmem>>, %arg10: memref<3x2xf32, #tpu.memory_space<vmem>>, %arg11: memref<2x32xf32, #tpu.memory_space<vmem>>, %arg12: memref<2x2xf32, #tpu.memory_space<vmem>>) attributes {dimension_semantics = [#tpu.dimension_semantics<parallel>], iteration_bounds = array<i64: 1>, scalar_prefetch = 0 : i64, scratch_operands = 0 : i64, tpu.core_type = #tpu.core_type<tc>, window_params = [{transform_indices = @transform_0, window_bounds = array<i64: 2, 2, 3>}, {transform_indices = @transform_1, window_bounds = array<i64: 2, 5>}, {pipeline_mode = #tpu.pipeline_mode<synchronous>, transform_indices = @transform_2, window_bounds = array<i64: 2, 3, 96>}, {pipeline_mode = #tpu.pipeline_mode<synchronous>, transform_indices = @transform_3, window_bounds = array<i64: 2, 1, 96>}, {pipeline_mode = #tpu.pipeline_mode<synchronous>, transform_indices = @transform_4, window_bounds = array<i64: 2, 32, 32>}, {pipeline_mode = #tpu.pipeline_mode<synchronous>, transform_indices = @transform_5, window_bounds = array<i64: 2, 3, 32>}, {pipeline_mode = #tpu.pipeline_mode<synchronous>, transform_indices = @transform_6, window_bounds = array<i64: 5, 36>}, {pipeline_mode = #tpu.pipeline_mode<synchronous>, transform_indices = @transform_7, window_bounds = array<i64: 1, 36>}, {pipeline_mode = #tpu.pipeline_mode<synchronous>, transform_indices = @transform_8, window_bounds = array<i64: 32, 2>}, {pipeline_mode = #tpu.pipeline_mode<synchronous>, transform_indices = @transform_9, window_bounds = array<i64: 3, 2>}, {transform_indices = @transform_10, window_bounds = array<i64: 2, 32>}, {transform_indices = @transform_11, window_bounds = array<i64: 2, 2>}]} {
    %c0 = arith.constant 0 : index
    %c0_0 = arith.constant 0 : index
    %0 = vector.load %arg2[%c0, %c0_0] : memref<2x5xf32, #tpu.memory_space<vmem>>, vector<2x5xf32>
    %c0_1 = arith.constant 0 : index
    %c0_2 = arith.constant 0 : index
    %1 = vector.load %arg7[%c0_1, %c0_2] : memref<5x36xf32, #tpu.memory_space<vmem>>, vector<5x36xf32>
    %c0_3 = arith.constant 0 : index
    %c0_4 = arith.constant 0 : index
    %2 = vector.load %arg8[%c0_3, %c0_4] : memref<1x36xf32, #tpu.memory_space<vmem>>, vector<1x36xf32>
    %c0_5 = arith.constant 0 : index
    %c0_6 = arith.constant 0 : index
    %3 = vector.load %arg9[%c0_5, %c0_6] : memref<32x2xf32, #tpu.memory_space<vmem>>, vector<32x2xf32>
    %c0_7 = arith.constant 0 : index
    %c0_8 = arith.constant 0 : index
    %4 = vector.load %arg10[%c0_7, %c0_8] : memref<3x2xf32, #tpu.memory_space<vmem>>, vector<3x2xf32>
    %cst = arith.constant dense<0.000000e+00> : vector<2x36xf32>
    %5 = tpu.matmul %0, %1, %cst {dimension_numbers = #tpu.dot_dimension_numbers<[1], [0], [0], [1], [0, 0, 1, 1], [], []>} : vector<2x5xf32>, vector<5x36xf32>, vector<2x36xf32> -> vector<2x36xf32>
    %6 = vector.broadcast %2 : vector<1x36xf32> to vector<2x36xf32>
    %7 = arith.addf %5, %6 : vector<2x36xf32>
    %8 = vector.extract_strided_slice %7 {offsets = [0, 0], sizes = [2, 32], strides = [1, 1]} : vector<2x36xf32> to vector<2x32xf32>
    %9 = vector.extract_strided_slice %7 {offsets = [0, 32], sizes = [2, 2], strides = [1, 1]} : vector<2x36xf32> to vector<2x2xf32>
    %10 = vector.extract_strided_slice %7 {offsets = [0, 34], sizes = [2, 2], strides = [1, 1]} : vector<2x36xf32> to vector<2x2xf32>
    %cst_9 = arith.constant 0.000000e+00 : f32
    %11 = vector.broadcast %cst_9 : f32 to vector<2x32xf32>
    %12 = arith.cmpf ogt, %8, %11 : vector<2x32xf32>
    %13 = math.exp %8 : vector<2x32xf32>
    %cst_10 = arith.constant 1.000000e+00 : f32
    %14 = vector.broadcast %cst_10 : f32 to vector<2x32xf32>
    %15 = arith.subf %13, %14 : vector<2x32xf32>
    %16 = arith.select %12, %8, %15 : vector<2x32xi1>, vector<2x32xf32>
    %cst_11 = arith.constant dense<0.000000e+00> : vector<2x2xf32>
    %17 = tpu.matmul %16, %3, %cst_11 {dimension_numbers = #tpu.dot_dimension_numbers<[1], [0], [0], [1], [0, 0, 1, 1], [], []>} : vector<2x32xf32>, vector<32x2xf32>, vector<2x2xf32> -> vector<2x2xf32>
    %18 = vector.extract_strided_slice %4 {offsets = [0, 0], sizes = [1, 2], strides = [1, 1]} : vector<3x2xf32> to vector<1x2xf32>
    %19 = vector.broadcast %18 : vector<1x2xf32> to vector<2x2xf32>
    %20 = arith.addf %17, %19 : vector<2x2xf32>
    %cst_12 = arith.constant 0.000000e+00 : f32
    %21 = vector.broadcast %cst_12 : f32 to vector<2x2xf32>
    %22 = arith.subf %21, %9 : vector<2x2xf32>
    %23 = math.exp %22 : vector<2x2xf32>
    %cst_13 = arith.constant 1.000000e+00 : f32
    %24 = vector.broadcast %cst_13 : f32 to vector<2x2xf32>
    %25 = arith.addf %24, %23 : vector<2x2xf32>
    %cst_14 = arith.constant 1.000000e+00 : f32
    %26 = vector.broadcast %cst_14 : f32 to vector<2x2xf32>
    %27 = arith.divf %26, %25 : vector<2x2xf32>
    %28 = arith.mulf %27, %20 : vector<2x2xf32>
    %cst_15 = arith.constant 1.000000e+00 : f32
    %29 = vector.broadcast %cst_15 : f32 to vector<2x2xf32>
    %30 = arith.subf %29, %27 : vector<2x2xf32>
    %31 = arith.mulf %30, %10 : vector<2x2xf32>
    %32 = arith.addf %28, %31 : vector<2x2xf32>
    %cst_16 = arith.constant dense<0.000000e+00> : vector<2xf32>
    %33 = vector.multi_reduction <add>, %32, %cst_16 [1] : vector<2x2xf32> to vector<2xf32>
    %34 = vector.shape_cast %33 : vector<2xf32> to vector<2x1xf32>
    %cst_17 = arith.constant 2.000000e+00 : f32
    %35 = vector.broadcast %cst_17 : f32 to vector<2x1xf32>
    %36 = arith.divf %34, %35 : vector<2x1xf32>
    %37 = vector.broadcast %36 : vector<2x1xf32> to vector<2x2xf32>
    %38 = arith.subf %32, %37 : vector<2x2xf32>
    %39 = arith.mulf %38, %38 : vector<2x2xf32>
    %cst_18 = arith.constant dense<0.000000e+00> : vector<2xf32>
    %40 = vector.multi_reduction <add>, %39, %cst_18 [1] : vector<2x2xf32> to vector<2xf32>
    %41 = vector.shape_cast %40 : vector<2xf32> to vector<2x1xf32>
    %cst_19 = arith.constant 2.000000e+00 : f32
    %42 = vector.broadcast %cst_19 : f32 to vector<2x1xf32>
    %43 = arith.divf %41, %42 : vector<2x1xf32>
    %44 = vector.broadcast %36 : vector<2x1xf32> to vector<2x2xf32>
    %45 = arith.subf %32, %44 : vector<2x2xf32>
    %cst_20 = arith.constant 9.99999974E-6 : f32
    %46 = vector.broadcast %cst_20 : f32 to vector<2x1xf32>
    %47 = arith.addf %43, %46 : vector<2x1xf32>
    %48 = math.rsqrt %47 : vector<2x1xf32>
    %49 = vector.broadcast %48 : vector<2x1xf32> to vector<2x2xf32>
    %50 = arith.mulf %45, %49 : vector<2x2xf32>
    %51 = vector.extract_strided_slice %4 {offsets = [1, 0], sizes = [1, 2], strides = [1, 1]} : vector<3x2xf32> to vector<1x2xf32>
    %52 = vector.broadcast %51 : vector<1x2xf32> to vector<2x2xf32>
    %53 = arith.mulf %50, %52 : vector<2x2xf32>
    %54 = vector.extract_strided_slice %4 {offsets = [2, 0], sizes = [1, 2], strides = [1, 1]} : vector<3x2xf32> to vector<1x2xf32>
    %55 = vector.broadcast %54 : vector<1x2xf32> to vector<2x2xf32>
    %56 = arith.addf %53, %55 : vector<2x2xf32>
    %c0_21 = arith.constant 0 : index
    %c0_22 = arith.constant 0 : index
    %57 = vector.load %arg12[%c0_21, %c0_22] : memref<2x2xf32, #tpu.memory_space<vmem>>, vector<2x2xf32>
    tpu.vector_store %arg12[%c0_21, %c0_22], %56 {strides = array<i32>} : memref<2x2xf32, #tpu.memory_space<vmem>>, vector<2x2xf32>,
    %cst_23 = arith.constant dense<0xFF800000> : vector<2xf32>
    %58 = vector.multi_reduction <maximumf>, %56, %cst_23 [1] : vector<2x2xf32> to vector<2xf32>
    %59 = vector.shape_cast %58 : vector<2xf32> to vector<2x1xf32>
    %60 = vector.broadcast %59 : vector<2x1xf32> to vector<2x2xf32>
    %61 = arith.subf %56, %60 : vector<2x2xf32>
    %62 = math.exp %61 : vector<2x2xf32>
    %cst_24 = arith.constant dense<0.000000e+00> : vector<2xf32>
    %63 = vector.multi_reduction <add>, %62, %cst_24 [1] : vector<2x2xf32> to vector<2xf32>
    %64 = vector.shape_cast %63 : vector<2xf32> to vector<2x1xf32>
    %65 = tpu.reciprocal %64 {approx = true} : vector<2x1xf32> -> vector<2x1xf32>
    %66 = vector.broadcast %65 : vector<2x1xf32> to vector<2x2xf32>
    %67 = arith.mulf %62, %66 : vector<2x2xf32>
    %cst_25 = arith.constant 0.000000e+00 : f32
    %68 = vector.broadcast %cst_25 : f32 to vector<2x32xf32>
    %c0_26 = arith.constant 0 : index
    %c0_27 = arith.constant 0 : index
    %c0_28 = arith.constant 0 : index
    %69 = vector.load %arg1[%c0_26, %c0_27, %c0_28] : memref<2x2x3xf32, #tpu.memory_space<vmem>>, vector<1x2x3xf32>
    %70 = vector.shape_cast %69 : vector<1x2x3xf32> to vector<2x3xf32>
    %c0_29 = arith.constant 0 : index
    %c0_30 = arith.constant 0 : index
    %c0_31 = arith.constant 0 : index
    %71 = vector.load %arg3[%c0_29, %c0_30, %c0_31] : memref<2x3x96xf32, #tpu.memory_space<vmem>>, vector<1x3x96xf32>
    %72 = vector.shape_cast %71 : vector<1x3x96xf32> to vector<3x96xf32>
    %c0_32 = arith.constant 0 : index
    %c0_33 = arith.constant 0 : index
    %c0_34 = arith.constant 0 : index
    %73 = vector.load %arg4[%c0_32, %c0_33, %c0_34] : memref<2x1x96xf32, #tpu.memory_space<vmem>>, vector<1x1x96xf32>
    %74 = vector.shape_cast %73 : vector<1x1x96xf32> to vector<1x96xf32>
    %c0_35 = arith.constant 0 : index
    %c0_36 = arith.constant 0 : index
    %c0_37 = arith.constant 0 : index
    %75 = vector.load %arg5[%c0_35, %c0_36, %c0_37] : memref<2x32x32xf32, #tpu.memory_space<vmem>>, vector<1x32x32xf32>
    %76 = vector.shape_cast %75 : vector<1x32x32xf32> to vector<32x32xf32>
    %c0_38 = arith.constant 0 : index
    %c0_39 = arith.constant 0 : index
    %c0_40 = arith.constant 0 : index
    %77 = vector.load %arg6[%c0_38, %c0_39, %c0_40] : memref<2x3x32xf32, #tpu.memory_space<vmem>>, vector<1x3x32xf32>
    %78 = vector.shape_cast %77 : vector<1x3x32xf32> to vector<3x32xf32>
    %cst_41 = arith.constant dense<0.000000e+00> : vector<2x96xf32>
    %79 = tpu.matmul %70, %72, %cst_41 {dimension_numbers = #tpu.dot_dimension_numbers<[1], [0], [0], [1], [0, 0, 1, 1], [], []>} : vector<2x3xf32>, vector<3x96xf32>, vector<2x96xf32> -> vector<2x96xf32>
    %80 = vector.broadcast %74 : vector<1x96xf32> to vector<2x96xf32>
    %81 = arith.addf %79, %80 : vector<2x96xf32>
    %82 = vector.extract_strided_slice %81 {offsets = [0, 0], sizes = [2, 32], strides = [1, 1]} : vector<2x96xf32> to vector<2x32xf32>
    %83 = vector.extract_strided_slice %81 {offsets = [0, 32], sizes = [2, 32], strides = [1, 1]} : vector<2x96xf32> to vector<2x32xf32>
    %84 = vector.extract_strided_slice %81 {offsets = [0, 64], sizes = [2, 32], strides = [1, 1]} : vector<2x96xf32> to vector<2x32xf32>
    %cst_42 = arith.constant 0.000000e+00 : f32
    %85 = vector.broadcast %cst_42 : f32 to vector<2x32xf32>
    %86 = arith.cmpf ogt, %82, %85 : vector<2x32xf32>
    %87 = math.exp %82 : vector<2x32xf32>
    %cst_43 = arith.constant 1.000000e+00 : f32
    %88 = vector.broadcast %cst_43 : f32 to vector<2x32xf32>
    %89 = arith.subf %87, %88 : vector<2x32xf32>
    %90 = arith.select %86, %82, %89 : vector<2x32xi1>, vector<2x32xf32>
    %cst_44 = arith.constant dense<0.000000e+00> : vector<2x32xf32>
    %91 = tpu.matmul %90, %76, %cst_44 {dimension_numbers = #tpu.dot_dimension_numbers<[1], [0], [0], [1], [0, 0, 1, 1], [], []>} : vector<2x32xf32>, vector<32x32xf32>, vector<2x32xf32> -> vector<2x32xf32>
    %92 = vector.extract_strided_slice %78 {offsets = [0, 0], sizes = [1, 32], strides = [1, 1]} : vector<3x32xf32> to vector<1x32xf32>
    %93 = vector.broadcast %92 : vector<1x32xf32> to vector<2x32xf32>
    %94 = arith.addf %91, %93 : vector<2x32xf32>
    %cst_45 = arith.constant 0.000000e+00 : f32
    %95 = vector.broadcast %cst_45 : f32 to vector<2x32xf32>
    %96 = arith.subf %95, %83 : vector<2x32xf32>
    %97 = math.exp %96 : vector<2x32xf32>
    %cst_46 = arith.constant 1.000000e+00 : f32
    %98 = vector.broadcast %cst_46 : f32 to vector<2x32xf32>
    %99 = arith.addf %98, %97 : vector<2x32xf32>
    %cst_47 = arith.constant 1.000000e+00 : f32
    %100 = vector.broadcast %cst_47 : f32 to vector<2x32xf32>
    %101 = arith.divf %100, %99 : vector<2x32xf32>
    %102 = arith.mulf %101, %94 : vector<2x32xf32>
    %cst_48 = arith.constant 1.000000e+00 : f32
    %103 = vector.broadcast %cst_48 : f32 to vector<2x32xf32>
    %104 = arith.subf %103, %101 : vector<2x32xf32>
    %105 = arith.mulf %104, %84 : vector<2x32xf32>
    %106 = arith.addf %102, %105 : vector<2x32xf32>
    %cst_49 = arith.constant dense<0.000000e+00> : vector<2xf32>
    %107 = vector.multi_reduction <add>, %106, %cst_49 [1] : vector<2x32xf32> to vector<2xf32>
    %108 = vector.shape_cast %107 : vector<2xf32> to vector<2x1xf32>
    %cst_50 = arith.constant 3.200000e+01 : f32
    %109 = vector.broadcast %cst_50 : f32 to vector<2x1xf32>
    %110 = arith.divf %108, %109 : vector<2x1xf32>
    %111 = vector.broadcast %110 : vector<2x1xf32> to vector<2x32xf32>
    %112 = arith.subf %106, %111 : vector<2x32xf32>
    %113 = arith.mulf %112, %112 : vector<2x32xf32>
    %cst_51 = arith.constant dense<0.000000e+00> : vector<2xf32>
    %114 = vector.multi_reduction <add>, %113, %cst_51 [1] : vector<2x32xf32> to vector<2xf32>
    %115 = vector.shape_cast %114 : vector<2xf32> to vector<2x1xf32>
    %cst_52 = arith.constant 3.200000e+01 : f32
    %116 = vector.broadcast %cst_52 : f32 to vector<2x1xf32>
    %117 = arith.divf %115, %116 : vector<2x1xf32>
    %118 = vector.broadcast %110 : vector<2x1xf32> to vector<2x32xf32>
    %119 = arith.subf %106, %118 : vector<2x32xf32>
    %cst_53 = arith.constant 9.99999974E-6 : f32
    %120 = vector.broadcast %cst_53 : f32 to vector<2x1xf32>
    %121 = arith.addf %117, %120 : vector<2x1xf32>
    %122 = math.rsqrt %121 : vector<2x1xf32>
    %123 = vector.broadcast %122 : vector<2x1xf32> to vector<2x32xf32>
    %124 = arith.mulf %119, %123 : vector<2x32xf32>
    %125 = vector.extract_strided_slice %78 {offsets = [1, 0], sizes = [1, 32], strides = [1, 1]} : vector<3x32xf32> to vector<1x32xf32>
    %126 = vector.broadcast %125 : vector<1x32xf32> to vector<2x32xf32>
    %127 = arith.mulf %124, %126 : vector<2x32xf32>
    %128 = vector.extract_strided_slice %78 {offsets = [2, 0], sizes = [1, 32], strides = [1, 1]} : vector<3x32xf32> to vector<1x32xf32>
    %129 = vector.broadcast %128 : vector<1x32xf32> to vector<2x32xf32>
    %130 = arith.addf %127, %129 : vector<2x32xf32>
    %131 = vector.extract_strided_slice %67 {offsets = [0, 0], sizes = [2, 1], strides = [1, 1]} : vector<2x2xf32> to vector<2x1xf32>
    %132 = vector.broadcast %131 : vector<2x1xf32> to vector<2x32xf32>
    %133 = arith.mulf %132, %130 : vector<2x32xf32>
    %134 = arith.addf %68, %133 : vector<2x32xf32>
    %c1 = arith.constant 1 : index
    %c0_54 = arith.constant 0 : index
    %c0_55 = arith.constant 0 : index
    %135 = vector.load %arg1[%c1, %c0_54, %c0_55] : memref<2x2x3xf32, #tpu.memory_space<vmem>>, vector<1x2x3xf32>
    %136 = vector.shape_cast %135 : vector<1x2x3xf32> to vector<2x3xf32>
    %c1_56 = arith.constant 1 : index
    %c0_57 = arith.constant 0 : index
    %c0_58 = arith.constant 0 : index
    %137 = vector.load %arg3[%c1_56, %c0_57, %c0_58] : memref<2x3x96xf32, #tpu.memory_space<vmem>>, vector<1x3x96xf32>
    %138 = vector.shape_cast %137 : vector<1x3x96xf32> to vector<3x96xf32>
    %c1_59 = arith.constant 1 : index
    %c0_60 = arith.constant 0 : index
    %c0_61 = arith.constant 0 : index
    %139 = vector.load %arg4[%c1_59, %c0_60, %c0_61] : memref<2x1x96xf32, #tpu.memory_space<vmem>>, vector<1x1x96xf32>
    %140 = vector.shape_cast %139 : vector<1x1x96xf32> to vector<1x96xf32>
    %c1_62 = arith.constant 1 : index
    %c0_63 = arith.constant 0 : index
    %c0_64 = arith.constant 0 : index
    %141 = vector.load %arg5[%c1_62, %c0_63, %c0_64] : memref<2x32x32xf32, #tpu.memory_space<vmem>>, vector<1x32x32xf32>
    %142 = vector.shape_cast %141 : vector<1x32x32xf32> to vector<32x32xf32>
    %c1_65 = arith.constant 1 : index
    %c0_66 = arith.constant 0 : index
    %c0_67 = arith.constant 0 : index
    %143 = vector.load %arg6[%c1_65, %c0_66, %c0_67] : memref<2x3x32xf32, #tpu.memory_space<vmem>>, vector<1x3x32xf32>
    %144 = vector.shape_cast %143 : vector<1x3x32xf32> to vector<3x32xf32>
    %cst_68 = arith.constant dense<0.000000e+00> : vector<2x96xf32>
    %145 = tpu.matmul %136, %138, %cst_68 {dimension_numbers = #tpu.dot_dimension_numbers<[1], [0], [0], [1], [0, 0, 1, 1], [], []>} : vector<2x3xf32>, vector<3x96xf32>, vector<2x96xf32> -> vector<2x96xf32>
    %146 = vector.broadcast %140 : vector<1x96xf32> to vector<2x96xf32>
    %147 = arith.addf %145, %146 : vector<2x96xf32>
    %148 = vector.extract_strided_slice %147 {offsets = [0, 0], sizes = [2, 32], strides = [1, 1]} : vector<2x96xf32> to vector<2x32xf32>
    %149 = vector.extract_strided_slice %147 {offsets = [0, 32], sizes = [2, 32], strides = [1, 1]} : vector<2x96xf32> to vector<2x32xf32>
    %150 = vector.extract_strided_slice %147 {offsets = [0, 64], sizes = [2, 32], strides = [1, 1]} : vector<2x96xf32> to vector<2x32xf32>
    %cst_69 = arith.constant 0.000000e+00 : f32
    %151 = vector.broadcast %cst_69 : f32 to vector<2x32xf32>
    %152 = arith.cmpf ogt, %148, %151 : vector<2x32xf32>
    %153 = math.exp %148 : vector<2x32xf32>
    %cst_70 = arith.constant 1.000000e+00 : f32
    %154 = vector.broadcast %cst_70 : f32 to vector<2x32xf32>
    %155 = arith.subf %153, %154 : vector<2x32xf32>
    %156 = arith.select %152, %148, %155 : vector<2x32xi1>, vector<2x32xf32>
    %cst_71 = arith.constant dense<0.000000e+00> : vector<2x32xf32>
    %157 = tpu.matmul %156, %142, %cst_71 {dimension_numbers = #tpu.dot_dimension_numbers<[1], [0], [0], [1], [0, 0, 1, 1], [], []>} : vector<2x32xf32>, vector<32x32xf32>, vector<2x32xf32> -> vector<2x32xf32>
    %158 = vector.extract_strided_slice %144 {offsets = [0, 0], sizes = [1, 32], strides = [1, 1]} : vector<3x32xf32> to vector<1x32xf32>
    %159 = vector.broadcast %158 : vector<1x32xf32> to vector<2x32xf32>
    %160 = arith.addf %157, %159 : vector<2x32xf32>
    %cst_72 = arith.constant 0.000000e+00 : f32
    %161 = vector.broadcast %cst_72 : f32 to vector<2x32xf32>
    %162 = arith.subf %161, %149 : vector<2x32xf32>
    %163 = math.exp %162 : vector<2x32xf32>
    %cst_73 = arith.constant 1.000000e+00 : f32
    %164 = vector.broadcast %cst_73 : f32 to vector<2x32xf32>
    %165 = arith.addf %164, %163 : vector<2x32xf32>
    %cst_74 = arith.constant 1.000000e+00 : f32
    %166 = vector.broadcast %cst_74 : f32 to vector<2x32xf32>
    %167 = arith.divf %166, %165 : vector<2x32xf32>
    %168 = arith.mulf %167, %160 : vector<2x32xf32>
    %cst_75 = arith.constant 1.000000e+00 : f32
    %169 = vector.broadcast %cst_75 : f32 to vector<2x32xf32>
    %170 = arith.subf %169, %167 : vector<2x32xf32>
    %171 = arith.mulf %170, %150 : vector<2x32xf32>
    %172 = arith.addf %168, %171 : vector<2x32xf32>
    %cst_76 = arith.constant dense<0.000000e+00> : vector<2xf32>
    %173 = vector.multi_reduction <add>, %172, %cst_76 [1] : vector<2x32xf32> to vector<2xf32>
    %174 = vector.shape_cast %173 : vector<2xf32> to vector<2x1xf32>
    %cst_77 = arith.constant 3.200000e+01 : f32
    %175 = vector.broadcast %cst_77 : f32 to vector<2x1xf32>
    %176 = arith.divf %174, %175 : vector<2x1xf32>
    %177 = vector.broadcast %176 : vector<2x1xf32> to vector<2x32xf32>
    %178 = arith.subf %172, %177 : vector<2x32xf32>
    %179 = arith.mulf %178, %178 : vector<2x32xf32>
    %cst_78 = arith.constant dense<0.000000e+00> : vector<2xf32>
    %180 = vector.multi_reduction <add>, %179, %cst_78 [1] : vector<2x32xf32> to vector<2xf32>
    %181 = vector.shape_cast %180 : vector<2xf32> to vector<2x1xf32>
    %cst_79 = arith.constant 3.200000e+01 : f32
    %182 = vector.broadcast %cst_79 : f32 to vector<2x1xf32>
    %183 = arith.divf %181, %182 : vector<2x1xf32>
    %184 = vector.broadcast %176 : vector<2x1xf32> to vector<2x32xf32>
    %185 = arith.subf %172, %184 : vector<2x32xf32>
    %cst_80 = arith.constant 9.99999974E-6 : f32
    %186 = vector.broadcast %cst_80 : f32 to vector<2x1xf32>
    %187 = arith.addf %183, %186 : vector<2x1xf32>
    %188 = math.rsqrt %187 : vector<2x1xf32>
    %189 = vector.broadcast %188 : vector<2x1xf32> to vector<2x32xf32>
    %190 = arith.mulf %185, %189 : vector<2x32xf32>
    %191 = vector.extract_strided_slice %144 {offsets = [1, 0], sizes = [1, 32], strides = [1, 1]} : vector<3x32xf32> to vector<1x32xf32>
    %192 = vector.broadcast %191 : vector<1x32xf32> to vector<2x32xf32>
    %193 = arith.mulf %190, %192 : vector<2x32xf32>
    %194 = vector.extract_strided_slice %144 {offsets = [2, 0], sizes = [1, 32], strides = [1, 1]} : vector<3x32xf32> to vector<1x32xf32>
    %195 = vector.broadcast %194 : vector<1x32xf32> to vector<2x32xf32>
    %196 = arith.addf %193, %195 : vector<2x32xf32>
    %197 = vector.extract_strided_slice %67 {offsets = [0, 1], sizes = [2, 1], strides = [1, 1]} : vector<2x2xf32> to vector<2x1xf32>
    %198 = vector.broadcast %197 : vector<2x1xf32> to vector<2x32xf32>
    %199 = arith.mulf %198, %196 : vector<2x32xf32>
    %200 = arith.addf %134, %199 : vector<2x32xf32>
    %c0_81 = arith.constant 0 : index
    %c0_82 = arith.constant 0 : index
    %201 = vector.load %arg11[%c0_81, %c0_82] : memref<2x32xf32, #tpu.memory_space<vmem>>, vector<2x32xf32>
    tpu.vector_store %arg11[%c0_81, %c0_82], %200 {strides = array<i32>} : memref<2x32xf32, #tpu.memory_space<vmem>>, vector<2x32xf32>,
    return
  }
  func.func @transform_0(%arg0: i32) -> (i32, i32, i32) {
    %c0_i32 = arith.constant 0 : i32
    %c0_i32_0 = arith.constant 0 : i32
    %c0_i32_1 = arith.constant 0 : i32
    return %c0_i32, %arg0, %c0_i32_0 : i32, i32, i32
  }
  func.func @transform_1(%arg0: i32) -> (i32, i32) {
    %c0_i32 = arith.constant 0 : i32
    %c0_i32_0 = arith.constant 0 : i32
    return %arg0, %c0_i32 : i32, i32
  }
  func.func @transform_2(%arg0: i32) -> (i32, i32, i32) {
    %c0_i32 = arith.constant 0 : i32
    %c0_i32_0 = arith.constant 0 : i32
    %c0_i32_1 = arith.constant 0 : i32
    %c0_i32_2 = arith.constant 0 : i32
    return %c0_i32, %c0_i32_0, %c0_i32_1 : i32, i32, i32
  }
  func.func @transform_3(%arg0: i32) -> (i32, i32, i32) {
    %c0_i32 = arith.constant 0 : i32
    %c0_i32_0 = arith.constant 0 : i32
    %c0_i32_1 = arith.constant 0 : i32
    %c0_i32_2 = arith.constant 0 : i32
    return %c0_i32, %c0_i32_0, %c0_i32_1 : i32, i32, i32
  }
  func.func @transform_4(%arg0: i32) -> (i32, i32, i32) {
    %c0_i32 = arith.constant 0 : i32
    %c0_i32_0 = arith.constant 0 : i32
    %c0_i32_1 = arith.constant 0 : i32
    %c0_i32_2 = arith.constant 0 : i32
    return %c0_i32, %c0_i32_0, %c0_i32_1 : i32, i32, i32
  }
  func.func @transform_5(%arg0: i32) -> (i32, i32, i32) {
    %c0_i32 = arith.constant 0 : i32
    %c0_i32_0 = arith.constant 0 : i32
    %c0_i32_1 = arith.constant 0 : i32
    %c0_i32_2 = arith.constant 0 : i32
    return %c0_i32, %c0_i32_0, %c0_i32_1 : i32, i32, i32
  }
  func.func @transform_6(%arg0: i32) -> (i32, i32) {
    %c0_i32 = arith.constant 0 : i32
    %c0_i32_0 = arith.constant 0 : i32
    %c0_i32_1 = arith.constant 0 : i32
    return %c0_i32, %c0_i32_0 : i32, i32
  }
  func.func @transform_7(%arg0: i32) -> (i32, i32) {
    %c0_i32 = arith.constant 0 : i32
    %c0_i32_0 = arith.constant 0 : i32
    %c0_i32_1 = arith.constant 0 : i32
    return %c0_i32, %c0_i32_0 : i32, i32
  }
  func.func @transform_8(%arg0: i32) -> (i32, i32) {
    %c0_i32 = arith.constant 0 : i32
    %c0_i32_0 = arith.constant 0 : i32
    %c0_i32_1 = arith.constant 0 : i32
    return %c0_i32, %c0_i32_0 : i32, i32
  }
  func.func @transform_9(%arg0: i32) -> (i32, i32) {
    %c0_i32 = arith.constant 0 : i32
    %c0_i32_0 = arith.constant 0 : i32
    %c0_i32_1 = arith.constant 0 : i32
    return %c0_i32, %c0_i32_0 : i32, i32
  }
  func.func @transform_10(%arg0: i32) -> (i32, i32) {
    %c0_i32 = arith.constant 0 : i32
    %c0_i32_0 = arith.constant 0 : i32
    return %arg0, %c0_i32 : i32, i32
  }
  func.func @transform_11(%arg0: i32) -> (i32, i32) {
    %c0_i32 = arith.constant 0 : i32
    %c0_i32_0 = arith.constant 0 : i32
    return %arg0, %c0_i32 : i32, i32
  }
}

</mosaic_0001>

<llo_original>
// kernel: tpu_custom_call.1
$region0: #{tpu_custom_call.1}
  #allocation0 [shape = 'u32[]', space=smem, size = 0x4, offset = 0x4, fixed_abs, tag = 'smem constant byte address 0x4 - core index']
  #allocation1 [shape = 'u32[144,128]{1,0:T(1,128)}', space=vmem, size = 0x12000, scoped, tag = 'internal scratch']
  %s0 = inlined_call_operand.vmem [shape: f32[2,2,3], index: 0, kind: input, shape index: {}]
  %s1 = inlined_call_operand.vmem [shape: f32[2,5], index: 1, kind: input, shape index: {}]
  %s2 = inlined_call_operand.vmem [shape: f32[2,3,96], index: 2, kind: input, shape index: {}]
  %s3 = inlined_call_operand.vmem [shape: f32[2,1,96], index: 3, kind: input, shape index: {}]
  %s4 = inlined_call_operand.vmem [shape: f32[2,32,32], index: 4, kind: input, shape index: {}]
  %s5 = inlined_call_operand.vmem [shape: f32[2,3,32], index: 5, kind: input, shape index: {}]
  %s6 = inlined_call_operand.vmem [shape: f32[5,36], index: 6, kind: input, shape index: {}]
  %s7 = inlined_call_operand.vmem [shape: f32[1,36], index: 7, kind: input, shape index: {}]
  %s8 = inlined_call_operand.vmem [shape: f32[32,2], index: 8, kind: input, shape index: {}]
  %s9 = inlined_call_operand.vmem [shape: f32[3,2], index: 9, kind: input, shape index: {}]
  %s10 = inlined_call_operand.hbm [shape: f32[2,32], index: 10, kind: output, shape index: {0}]
  %s11 = inlined_call_operand.hbm [shape: f32[2,2], index: 11, kind: output, shape index: {1}]
  %12 = xla_tuple %s10, %s11
  %s13 = sld [smem:[#allocation0]]
  $region58: #{tpu_custom_call.1} parent=0
    _
  %s15 = ssub.s32 1, %s13
  %s16 = scalar_select 0, %s15, %s13
  $region1: #{tpu_custom_call.1} parent=0
    #allocation2 [shape = 'u8[1024]{0}', space=vmem, size = 0x400, scoped, tag = 'output window, operand 0, single buffered']
    #allocation3 [shape = 's32[1]{0}', space=sflag, size = 0x4, scoped, tag = 'scoped memory for tpu_custom_call.1']
    #allocation4 [shape = 'u8[1024]{0}', space=vmem, size = 0x400, scoped, tag = 'output window, operand 1, single buffered']
    #allocation5 [shape = 's32[1]{0}', space=sflag, size = 0x4, scoped, tag = 'scoped memory for tpu_custom_call.1']
    %17 = vsyncpa [#allocation3], 0
    %18 = vsyncpa [#allocation5], 0
    // Predicated region
    $region2: #{tpu_custom_call.1} parent=1 // pred_check
      _
    $region3: #{tpu_custom_call.1} parent=1 // pred_check_branch
      %20 = sbr.rel (0) target = $region5
    $region4: #{tpu_custom_call.1} parent=1 // pred_region
      _
    $region5: #{tpu_custom_call.1} parent=1 // pred_fallthru
      _
    // Predicated region
    $region6: #{tpu_custom_call.1} parent=1 // pred_check
      _
    $region7: #{tpu_custom_call.1} parent=1 // pred_check_branch
      %22 = sbr.rel (0) target = $region9
    $region8: #{tpu_custom_call.1} parent=1 // pred_region
      _
    $region9: #{tpu_custom_call.1} parent=1 // pred_fallthru
      _
    // Predicated region
    $region10: #{tpu_custom_call.1} parent=1 // pred_check
      _
    $region11: #{tpu_custom_call.1} parent=1 // pred_check_branch
      %24 = sbr.rel (0) target = $region13
    $region12: #{tpu_custom_call.1} parent=1 // pred_region
      _
    $region13: #{tpu_custom_call.1} parent=1 // pred_fallthru
      _
    // Predicated region
    $region14: #{tpu_custom_call.1} parent=1 // pred_check
      _
    $region15: #{tpu_custom_call.1} parent=1 // pred_check_branch
      %26 = sbr.rel (0) target = $region17
    $region16: #{tpu_custom_call.1} parent=1 // pred_region
      _
    $region17: #{tpu_custom_call.1} parent=1 // pred_fallthru
      _
    // Predicated region
    $region18: #{tpu_custom_call.1} parent=1 // pred_check
      _
    $region19: #{tpu_custom_call.1} parent=1 // pred_check_branch
      %28 = sbr.rel (0) target = $region21
    $region20: #{tpu_custom_call.1} parent=1 // pred_region
      _
    $region21: #{tpu_custom_call.1} parent=1 // pred_fallthru
      _
    // Predicated region
    $region22: #{tpu_custom_call.1} parent=1 // pred_check
      _
    $region23: #{tpu_custom_call.1} parent=1 // pred_check_branch
      %30 = sbr.rel (0) target = $region25
    $region24: #{tpu_custom_call.1} parent=1 // pred_region
      _
    $region25: #{tpu_custom_call.1} parent=1 // pred_fallthru
      _
    // Predicated region
    $region26: #{tpu_custom_call.1} parent=1 // pred_check
      _
    $region27: #{tpu_custom_call.1} parent=1 // pred_check_branch
      %32 = sbr.rel (0) target = $region29
    $region28: #{tpu_custom_call.1} parent=1 // pred_region
      _
    $region29: #{tpu_custom_call.1} parent=1 // pred_fallthru
      _
    // Predicated region
    $region30: #{tpu_custom_call.1} parent=1 // pred_check
      _
    $region31: #{tpu_custom_call.1} parent=1 // pred_check_branch
      %34 = sbr.rel (0) target = $region33
    $region32: #{tpu_custom_call.1} parent=1 // pred_region
      _
    $region33: #{tpu_custom_call.1} parent=1 // pred_fallthru
      _
    // Predicated region
    $region34: #{tpu_custom_call.1} parent=1 // pred_check
      _
    $region35: #{tpu_custom_call.1} parent=1 // pred_check_branch
      %36 = sbr.rel (0) target = $region37
    $region36: #{tpu_custom_call.1} parent=1 // pred_region
      _
    $region37: #{tpu_custom_call.1} parent=1 // pred_fallthru
      _
    // Predicated region
    $region38: #{tpu_custom_call.1} parent=1 // pred_check
      _
    $region39: #{tpu_custom_call.1} parent=1 // pred_check_branch
      %38 = sbr.rel (0) target = $region41
    $region40: #{tpu_custom_call.1} parent=1 // pred_region
      _
    $region41: #{tpu_custom_call.1} parent=1 // pred_fallthru
      _
    %v39 = vld [vmem:[%s1] sm:$0x3]
    %v40 = vld [vmem:[%s6] sm:$0x1f]
    %v41 = vld [vmem:[%s7] sm:$0x1]
    %v42 = vld [vmem:[%s8] sm:$0xff]
    %v43 = vld [vmem:[%s8 + $0x8] sm:$0xff]
    %v44 = vld [vmem:[%s8 + $0x10] sm:$0xff]
    %v45 = vld [vmem:[%s8 + $0x18] sm:$0xff]
    %v46 = vld [vmem:[%s9] sm:$0x7]
    %v48 = vlaneseq
    %v49 = vshrl.u32 %v48, 7
    %v50 = vsub.s32 0, %v49
    %v51 = vrot.slane %v41, %v50
    %vm53 = vcmask 39936
    %v55 = vsel %vm53, %v39, 0
    %vm57 = vcmask 1044480
    %v59 = vsel %vm57, %v40, 0
    %61 = vmatprep.subr.mxu0 0.0
    %62 = vmatpush1.msra.mxu0 %v59
    %63 = vmatprep.subr.mxu0 0.0
    %64 = vmatpush1.msra.mxu0 0.0
    %65 = vmatprep.subr.mxu0 0.0
    %66 = vmatpush1.msra.mxu0 0.0
    %67 = vmatprep.subr.mxu0 0.0
    %68 = vmatpush1.msra.mxu0 0.0
    %69 = vmatprep.subr.mxu0 0.0
    %70 = vmatpush1.msra.mxu0 0.0
    %71 = vmatprep.subr.mxu0 0.0
    %72 = vmatpush1.msra.mxu0 0.0
    %73 = vmatprep.subr.mxu0 0.0
    %74 = vmatpush1.msra.mxu0 0.0
    %75 = vmatprep.subr.mxu0 0.0
    %76 = vmatpush1.msra.mxu0 0.0
    %77 = vmatprep.subr.mxu0 0.0
    %78 = vmatpush1.msra.mxu0 0.0
    %79 = vmatprep.subr.mxu0 0.0
    %80 = vmatpush1.msra.mxu0 0.0
    %81 = vmatprep.subr.mxu0 0.0
    %82 = vmatpush1.msra.mxu0 0.0
    %83 = vmatprep.subr.mxu0 0.0
    %84 = vmatpush1.msra.mxu0 0.0
    %85 = vmatprep.subr.mxu0 0.0
    %86 = vmatpush1.msra.mxu0 0.0
    %87 = vmatprep.subr.mxu0 0.0
    %88 = vmatpush1.msra.mxu0 0.0
    %89 = vmatprep.subr.mxu0 0.0
    %90 = vmatpush1.msra.mxu0 0.0
    %91 = vmatprep.subr.mxu0 0.0
    %92 = vmatpush1.msra.mxu0 0.0
    %93 = vmatprep.subr.mxu0 0.0
    %94 = vmatpush1.msra.mxu0 0.0
    %95 = vmatprep.subr.mxu0 0.0
    %96 = vmatpush1.msra.mxu0 0.0
    %97 = vmatprep.subr.mxu0 0.0
    %98 = vmatpush1.msra.mxu0 0.0
    %99 = vmatprep.subr.mxu0 0.0
    %100 = vmatpush1.msra.mxu0 0.0
    %101 = vmatprep.subr.mxu0 0.0
    %102 = vmatpush1.msra.mxu0 0.0
    %103 = vmatprep.subr.mxu0 0.0
    %104 = vmatpush1.msra.mxu0 0.0
    %105 = vmatprep.subr.mxu0 0.0
    %106 = vmatpush1.msra.mxu0 0.0
    %107 = vmatprep.subr.mxu0 0.0
    %108 = vmatpush1.msra.mxu0 0.0
    %109 = vmatprep.subr.mxu0 0.0
    %110 = vmatpush1.msra.mxu0 0.0
    %111 = vmatprep.subr.mxu0 0.0
    %112 = vmatpush1.msra.mxu0 0.0
    %113 = vmatprep.subr.mxu0 0.0
    %114 = vmatpush1.msra.mxu0 0.0
    %115 = vmatprep.subr.mxu0 0.0
    %116 = vmatpush1.msra.mxu0 0.0
    %117 = vmatprep.subr.mxu0 0.0
    %118 = vmatpush1.msra.mxu0 0.0
    %119 = vmatprep.subr.mxu0 0.0
    %120 = vmatpush1.msra.mxu0 0.0
    %121 = vmatprep.subr.mxu0 0.0
    %122 = vmatpush1.msra.mxu0 0.0
    %123 = vmatprep.subr.mxu0 0.0
    %124 = vmatpush1.msra.mxu0 0.0
    %125 = vmatprep.mubr.f32.mxu0 0.0
    %126 = vmatmul.mubr.f32.gmra.mrb[0].mxu0 %v55
    %v127 = vpop.f32.mrb[0].mxu0
    %v128 = vadd.f32 %v51, %v127
    %v129 = vpop.f32.mrb[0].mxu0
    %130 = vdwg.mxu0
    %vm131 = vcmp.gt.f32.partialorder %v128, 0.0
    %v132 = vmul.f32 %v128, 1.442695
    %v133 = vpow.pop %v132
    %v134 = vsub.f32 %v133, 1.0
    %v135 = vsel %vm131, %v128, %v134
    %v136 = vlaneseq
    %v137 = vshrl.u32 %v136, 7
    %v138 = vsub.s32 0, %v137
    %v139 = vrot.slane %v46, %v138
    %vm140 = vcmask 261120
    %v142 = vsel %vm140, %v135, 0
    %144 = vmatprep.subr.mxu0 0.0
    %145 = vmatpush1.msra.mxu0 %v42
    %146 = vmatprep.subr.mxu0 0.0
    %147 = vmatpush1.msra.mxu0 %v43
    %148 = vmatprep.subr.mxu0 0.0
    %149 = vmatpush1.msra.mxu0 %v44
    %150 = vmatprep.subr.mxu0 0.0
    %151 = vmatpush1.msra.mxu0 %v45
    %152 = vmatprep.subr.mxu0 0.0
    %153 = vmatpush1.msra.mxu0 0.0
    %154 = vmatprep.subr.mxu0 0.0
    %155 = vmatpush1.msra.mxu0 0.0
    %156 = vmatprep.subr.mxu0 0.0
    %157 = vmatpush1.msra.mxu0 0.0
    %158 = vmatprep.subr.mxu0 0.0
    %159 = vmatpush1.msra.mxu0 0.0
    %160 = vmatprep.subr.mxu0 0.0
    %161 = vmatpush1.msra.mxu0 0.0
    %162 = vmatprep.subr.mxu0 0.0
    %163 = vmatpush1.msra.mxu0 0.0
    %164 = vmatprep.subr.mxu0 0.0
    %165 = vmatpush1.msra.mxu0 0.0
    %166 = vmatprep.subr.mxu0 0.0
    %167 = vmatpush1.msra.mxu0 0.0
    %168 = vmatprep.subr.mxu0 0.0
    %169 = vmatpush1.msra.mxu0 0.0
    %170 = vmatprep.subr.mxu0 0.0
    %171 = vmatpush1.msra.mxu0 0.0
    %172 = vmatprep.subr.mxu0 0.0
    %173 = vmatpush1.msra.mxu0 0.0
    %174 = vmatprep.subr.mxu0 0.0
    %175 = vmatpush1.msra.mxu0 0.0
    %176 = vmatprep.subr.mxu0 0.0
    %177 = vmatpush1.msra.mxu0 0.0
    %178 = vmatprep.subr.mxu0 0.0
    %179 = vmatpush1.msra.mxu0 0.0
    %180 = vmatprep.subr.mxu0 0.0
    %181 = vmatpush1.msra.mxu0 0.0
    %182 = vmatprep.subr.mxu0 0.0
    %183 = vmatpush1.msra.mxu0 0.0
    %184 = vmatprep.subr.mxu0 0.0
    %185 = vmatpush1.msra.mxu0 0.0
    %186 = vmatprep.subr.mxu0 0.0
    %187 = vmatpush1.msra.mxu0 0.0
    %188 = vmatprep.subr.mxu0 0.0
    %189 = vmatpush1.msra.mxu0 0.0
    %190 = vmatprep.subr.mxu0 0.0
    %191 = vmatpush1.msra.mxu0 0.0
    %192 = vmatprep.subr.mxu0 0.0
    %193 = vmatpush1.msra.mxu0 0.0
    %194 = vmatprep.subr.mxu0 0.0
    %195 = vmatpush1.msra.mxu0 0.0
    %196 = vmatprep.subr.mxu0 0.0
    %197 = vmatpush1.msra.mxu0 0.0
    %198 = vmatprep.subr.mxu0 0.0
    %199 = vmatpush1.msra.mxu0 0.0
    %200 = vmatprep.subr.mxu0 0.0
    %201 = vmatpush1.msra.mxu0 0.0
    %202 = vmatprep.subr.mxu0 0.0
    %203 = vmatpush1.msra.mxu0 0.0
    %204 = vmatprep.subr.mxu0 0.0
    %205 = vmatpush1.msra.mxu0 0.0
    %206 = vmatprep.subr.mxu0 0.0
    %207 = vmatpush1.msra.mxu0 0.0
    %208 = vmatprep.mubr.f32.mxu0 0.0
    %209 = vmatmul.mubr.f32.gmra.mrb[0].mxu0 %v142
    %v210 = vpop.f32.mrb[0].mxu0
    %v211 = vadd.f32 %v139, %v210
    %v212 = vpop.f32.mrb[0].mxu0
    %213 = vdwg.mxu0
    %v214 = vsub.f32 0.0, %v128
    %v215 = vmul.f32 %v214, 1.442695
    %v216 = vpow.pop %v215
    %v217 = vadd.f32 %v216, 1.0
    %v218 = vrcp.pop %v217
    %v219 = vmul.f32 1.0, %v218
    %221 = vrot.lane.b32.xlu0 %v211, 32
    %v222 = vpop.permute.xlu0 %221
    %v224 = vmul.f32 %v219, %v222
    %v225 = vsub.f32 1.0, %v219
    %227 = vrot.lane.b32.xlu0 %v128, 126
    %v228 = vpop.permute.xlu0 %227
    %v230 = vmul.f32 %v225, %v228
    %v231 = vadd.f32 %v224, %v230
    %233 = vrot.lane.b32.xlu0 %v231, 96
    %v234 = vpop.permute.xlu0 %233
    %vm236 = vcmask 9216
    %v237 = vsel %vm236, %v234, 0.0
    %238 = vadd.xlane.f32.xlu0 %v237
    %v239 = vpop.xlane.xlu0 %238
    %v240 = vrcp.pop 2.0
    %v241 = vmul.f32 %v239, %v240
    %v242 = vsub.f32 %v231, %v241
    %v243 = vmul.f32 %v242, %v242
    %245 = vrot.lane.b32.xlu0 %v243, 96
    %v246 = vpop.permute.xlu0 %245
    %v248 = vsel %vm236, %v246, 0.0
    %249 = vadd.xlane.f32.xlu0 %v248
    %v250 = vpop.xlane.xlu0 %249
    %v251 = vmul.f32 %v250, %v240
    %v252 = vadd.f32 %v251, 1e-05
    %v253 = vrsqrt.pop %v252
    %v254 = vmul.f32 %v242, %v253
    %v255 = vlaneseq
    %v256 = vshrl.u32 %v255, 7
    %v257 = vsub.s32 1, %v256
    %v258 = vrot.slane %v46, %v257
    %260 = vrot.lane.b32.xlu0 %v258, 32
    %v261 = vpop.permute.xlu0 %260
    %v263 = vmul.f32 %v254, %v261
    %v264 = vlaneseq
    %v265 = vshrl.u32 %v264, 7
    %v266 = vsub.s32 2, %v265
    %v267 = vrot.slane %v46, %v266
    %269 = vrot.lane.b32.xlu0 %v267, 32
    %v270 = vpop.permute.xlu0 %269
    %v272 = vadd.f32 %v263, %v270
    %274 = vrot.lane.b32.xlu0 %v272, 96
    %v275 = vpop.permute.xlu0 %274
    %277 = vst.msk [vmem:[#allocation4] sm:$0x3] %vm236, %v275
    %vm278 = vcmask 271616
    %v279 = vsel %vm278, %v272, -inf
    %280 = vmax.xlane.f32.xlu0 %v279
    %v281 = vpop.xlane.xlu0 %280
    %v282 = vsub.f32 %v272, %v281
    %v283 = vmul.f32 %v282, 1.442695
    %v284 = vpow.pop %v283
    %286 = vrot.lane.b32.xlu0 %v284, 96
    %v287 = vpop.permute.xlu0 %286
    %v289 = vsel %vm236, %v287, 0.0
    %290 = vadd.xlane.f32.xlu0 %v289
    %v291 = vpop.xlane.xlu0 %290
    %v292 = vrcp.pop %v291
    %v293 = vmul.f32 %v284, %v292
    %v294 = vld [vmem:[%s0] sm:$0x3]
    %v295 = vld [vmem:[%s2] sm:$0x7]
    %v296 = vld [vmem:[%s3] sm:$0x1]
    %v297 = vld [vmem:[%s4] sm:$0xff]
    %v298 = vld [vmem:[%s4 + $0x8] sm:$0xff]
    %v299 = vld [vmem:[%s4 + $0x10] sm:$0xff]
    %v300 = vld [vmem:[%s4 + $0x18] sm:$0xff]
    %v301 = vld [vmem:[%s5] sm:$0x7]
    %v303 = vlaneseq
    %v304 = vshrl.u32 %v303, 7
    %v305 = vsub.s32 0, %v304
    %v306 = vrot.slane %v296, %v305
    %vm308 = vcmask 23552
    %v310 = vsel %vm308, %v294, 0
    %vm312 = vcmask 1042432
    %v314 = vsel %vm312, %v295, 0
    %316 = vmatprep.subr.mxu0 0.0
    %317 = vmatpush1.msra.mxu0 %v314
    %318 = vmatprep.subr.mxu0 0.0
    %319 = vmatpush1.msra.mxu0 0.0
    %320 = vmatprep.subr.mxu0 0.0
    %321 = vmatpush1.msra.mxu0 0.0
    %322 = vmatprep.subr.mxu0 0.0
    %323 = vmatpush1.msra.mxu0 0.0
    %324 = vmatprep.subr.mxu0 0.0
    %325 = vmatpush1.msra.mxu0 0.0
    %326 = vmatprep.subr.mxu0 0.0
    %327 = vmatpush1.msra.mxu0 0.0
    %328 = vmatprep.subr.mxu0 0.0
    %329 = vmatpush1.msra.mxu0 0.0
    %330 = vmatprep.subr.mxu0 0.0
    %331 = vmatpush1.msra.mxu0 0.0
    %332 = vmatprep.subr.mxu0 0.0
    %333 = vmatpush1.msra.mxu0 0.0
    %334 = vmatprep.subr.mxu0 0.0
    %335 = vmatpush1.msra.mxu0 0.0
    %336 = vmatprep.subr.mxu0 0.0
    %337 = vmatpush1.msra.mxu0 0.0
    %338 = vmatprep.subr.mxu0 0.0
    %339 = vmatpush1.msra.mxu0 0.0
    %340 = vmatprep.subr.mxu0 0.0
    %341 = vmatpush1.msra.mxu0 0.0
    %342 = vmatprep.subr.mxu0 0.0
    %343 = vmatpush1.msra.mxu0 0.0
    %344 = vmatprep.subr.mxu0 0.0
    %345 = vmatpush1.msra.mxu0 0.0
    %346 = vmatprep.subr.mxu0 0.0
    %347 = vmatpush1.msra.mxu0 0.0
    %348 = vmatprep.subr.mxu0 0.0
    %349 = vmatpush1.msra.mxu0 0.0
    %350 = vmatprep.subr.mxu0 0.0
    %351 = vmatpush1.msra.mxu0 0.0
    %352 = vmatprep.subr.mxu0 0.0
    %353 = vmatpush1.msra.mxu0 0.0
    %354 = vmatprep.subr.mxu0 0.0
    %355 = vmatpush1.msra.mxu0 0.0
    %356 = vmatprep.subr.mxu0 0.0
    %357 = vmatpush1.msra.mxu0 0.0
    %358 = vmatprep.subr.mxu0 0.0
    %359 = vmatpush1.msra.mxu0 0.0
    %360 = vmatprep.subr.mxu0 0.0
    %361 = vmatpush1.msra.mxu0 0.0
    %362 = vmatprep.subr.mxu0 0.0
    %363 = vmatpush1.msra.mxu0 0.0
    %364 = vmatprep.subr.mxu0 0.0
    %365 = vmatpush1.msra.mxu0 0.0
    %366 = vmatprep.subr.mxu0 0.0
    %367 = vmatpush1.msra.mxu0 0.0
    %368 = vmatprep.subr.mxu0 0.0
    %369 = vmatpush1.msra.mxu0 0.0
    %370 = vmatprep.subr.mxu0 0.0
    %371 = vmatpush1.msra.mxu0 0.0
    %372 = vmatprep.subr.mxu0 0.0
    %373 = vmatpush1.msra.mxu0 0.0
    %374 = vmatprep.subr.mxu0 0.0
    %375 = vmatpush1.msra.mxu0 0.0
    %376 = vmatprep.subr.mxu0 0.0
    %377 = vmatpush1.msra.mxu0 0.0
    %378 = vmatprep.subr.mxu0 0.0
    %379 = vmatpush1.msra.mxu0 0.0
    %380 = vmatprep.mubr.f32.mxu0 0.0
    %381 = vmatmul.mubr.f32.gmra.mrb[0].mxu0 %v310
    %v382 = vpop.f32.mrb[0].mxu0
    %v383 = vadd.f32 %v306, %v382
    %v384 = vpop.f32.mrb[0].mxu0
    %385 = vdwg.mxu0
    %vm386 = vcmp.gt.f32.partialorder %v383, 0.0
    %v387 = vmul.f32 %v383, 1.442695
    %v388 = vpow.pop %v387
    %v389 = vsub.f32 %v388, 1.0
    %v390 = vsel %vm386, %v383, %v389
    %v391 = vlaneseq
    %v392 = vshrl.u32 %v391, 7
    %v393 = vsub.s32 0, %v392
    %v394 = vrot.slane %v301, %v393
    %v396 = vsel %vm140, %v390, 0
    %398 = vmatprep.subr.mxu0 0.0
    %399 = vmatpush1.msra.mxu0 %v297
    %400 = vmatprep.subr.mxu0 0.0
    %401 = vmatpush1.msra.mxu0 %v298
    %402 = vmatprep.subr.mxu0 0.0
    %403 = vmatpush1.msra.mxu0 %v299
    %404 = vmatprep.subr.mxu0 0.0
    %405 = vmatpush1.msra.mxu0 %v300
    %406 = vmatprep.subr.mxu0 0.0
    %407 = vmatpush1.msra.mxu0 0.0
    %408 = vmatprep.subr.mxu0 0.0
    %409 = vmatpush1.msra.mxu0 0.0
    %410 = vmatprep.subr.mxu0 0.0
    %411 = vmatpush1.msra.mxu0 0.0
    %412 = vmatprep.subr.mxu0 0.0
    %413 = vmatpush1.msra.mxu0 0.0
    %414 = vmatprep.subr.mxu0 0.0
    %415 = vmatpush1.msra.mxu0 0.0
    %416 = vmatprep.subr.mxu0 0.0
    %417 = vmatpush1.msra.mxu0 0.0
    %418 = vmatprep.subr.mxu0 0.0
    %419 = vmatpush1.msra.mxu0 0.0
    %420 = vmatprep.subr.mxu0 0.0
    %421 = vmatpush1.msra.mxu0 0.0
    %422 = vmatprep.subr.mxu0 0.0
    %423 = vmatpush1.msra.mxu0 0.0
    %424 = vmatprep.subr.mxu0 0.0
    %425 = vmatpush1.msra.mxu0 0.0
    %426 = vmatprep.subr.mxu0 0.0
    %427 = vmatpush1.msra.mxu0 0.0
    %428 = vmatprep.subr.mxu0 0.0
    %429 = vmatpush1.msra.mxu0 0.0
    %430 = vmatprep.subr.mxu0 0.0
    %431 = vmatpush1.msra.mxu0 0.0
    %432 = vmatprep.subr.mxu0 0.0
    %433 = vmatpush1.msra.mxu0 0.0
    %434 = vmatprep.subr.mxu0 0.0
    %435 = vmatpush1.msra.mxu0 0.0
    %436 = vmatprep.subr.mxu0 0.0
    %437 = vmatpush1.msra.mxu0 0.0
    %438 = vmatprep.subr.mxu0 0.0
    %439 = vmatpush1.msra.mxu0 0.0
    %440 = vmatprep.subr.mxu0 0.0
    %441 = vmatpush1.msra.mxu0 0.0
    %442 = vmatprep.subr.mxu0 0.0
    %443 = vmatpush1.msra.mxu0 0.0
    %444 = vmatprep.subr.mxu0 0.0
    %445 = vmatpush1.msra.mxu0 0.0
    %446 = vmatprep.subr.mxu0 0.0
    %447 = vmatpush1.msra.mxu0 0.0
    %448 = vmatprep.subr.mxu0 0.0
    %449 = vmatpush1.msra.mxu0 0.0
    %450 = vmatprep.subr.mxu0 0.0
    %451 = vmatpush1.msra.mxu0 0.0
    %452 = vmatprep.subr.mxu0 0.0
    %453 = vmatpush1.msra.mxu0 0.0
    %454 = vmatprep.subr.mxu0 0.0
    %455 = vmatpush1.msra.mxu0 0.0
    %456 = vmatprep.subr.mxu0 0.0
    %457 = vmatpush1.msra.mxu0 0.0
    %458 = vmatprep.subr.mxu0 0.0
    %459 = vmatpush1.msra.mxu0 0.0
    %460 = vmatprep.subr.mxu0 0.0
    %461 = vmatpush1.msra.mxu0 0.0
    %462 = vmatprep.mubr.f32.mxu0 0.0
    %463 = vmatmul.mubr.f32.gmra.mrb[0].mxu0 %v396
    %v464 = vpop.f32.mrb[0].mxu0
    %v465 = vadd.f32 %v394, %v464
    %v466 = vpop.f32.mrb[0].mxu0
    %467 = vdwg.mxu0
    %v468 = vsub.f32 0.0, %v383
    %v469 = vmul.f32 %v468, 1.442695
    %v470 = vpow.pop %v469
    %v471 = vadd.f32 %v470, 1.0
    %v472 = vrcp.pop %v471
    %v473 = vmul.f32 1.0, %v472
    %475 = vrot.lane.b32.xlu0 %v465, 32
    %v476 = vpop.permute.xlu0 %475
    %v478 = vmul.f32 %v473, %v476
    %v479 = vsub.f32 1.0, %v473
    %481 = vrot.lane.b32.xlu0 %v383, 96
    %v482 = vpop.permute.xlu0 %481
    %v484 = vmul.f32 %v479, %v482
    %v485 = vadd.f32 %v478, %v484
    %487 = vrot.lane.b32.xlu0 %v485, 96
    %v488 = vpop.permute.xlu0 %487
    %vm490 = vcmask 254976
    %v491 = vsel %vm490, %v488, 0.0
    %492 = vadd.xlane.f32.xlu0 %v491
    %v493 = vpop.xlane.xlu0 %492
    %v494 = vrcp.pop 32.0
    %v495 = vmul.f32 %v493, %v494
    %v496 = vsub.f32 %v485, %v495
    %v497 = vmul.f32 %v496, %v496
    %499 = vrot.lane.b32.xlu0 %v497, 96
    %v500 = vpop.permute.xlu0 %499
    %v502 = vsel %vm490, %v500, 0.0
    %503 = vadd.xlane.f32.xlu0 %v502
    %v504 = vpop.xlane.xlu0 %503
    %v505 = vmul.f32 %v504, %v494
    %v506 = vadd.f32 %v505, 1e-05
    %v507 = vrsqrt.pop %v506
    %v508 = vmul.f32 %v496, %v507
    %v509 = vlaneseq
    %v510 = vshrl.u32 %v509, 7
    %v511 = vsub.s32 1, %v510
    %v512 = vrot.slane %v301, %v511
    %514 = vrot.lane.b32.xlu0 %v512, 32
    %v515 = vpop.permute.xlu0 %514
    %v517 = vmul.f32 %v508, %v515
    %v518 = vlaneseq
    %v519 = vshrl.u32 %v518, 7
    %v520 = vsub.s32 2, %v519
    %v521 = vrot.slane %v301, %v520
    %523 = vrot.lane.b32.xlu0 %v521, 32
    %v524 = vpop.permute.xlu0 %523
    %v526 = vadd.f32 %v517, %v524
    %528 = vset.pattern.permute.xlu0 32
    %529 = vperm.xlu0 %528, %v293
    %v530 = vpop.permute.xlu0 %529
    %v532 = vmul.f32 %v530, %v526
    %v533 = vadd.f32 %v532, 0.0
    %s534 = scalar_lea.vmem %s0, 2
    %v535 = vld [vmem:[%s534] sm:$0x3]
    %s536 = scalar_lea.vmem %s2, 4
    %v537 = vld [vmem:[%s536] sm:$0x7]
    %s538 = scalar_lea.vmem %s3, 1
    %v539 = vld [vmem:[%s538] sm:$0x1]
    %s540 = scalar_lea.vmem %s4, 32
    %v541 = vld [vmem:[%s540] sm:$0xff]
    %v542 = vld [vmem:[%s540 + $0x8] sm:$0xff]
    %v543 = vld [vmem:[%s540 + $0x10] sm:$0xff]
    %v544 = vld [vmem:[%s540 + $0x18] sm:$0xff]
    %s545 = scalar_lea.vmem %s5, 4
    %v546 = vld [vmem:[%s545] sm:$0x7]
    %v548 = vlaneseq
    %v549 = vshrl.u32 %v548, 7
    %v550 = vsub.s32 0, %v549
    %v551 = vrot.slane %v539, %v550
    %v554 = vsel %vm308, %v535, 0
    %v557 = vsel %vm312, %v537, 0
    %559 = vmatprep.subr.mxu0 0.0
    %560 = vmatpush1.msra.mxu0 %v557
    %561 = vmatprep.subr.mxu0 0.0
    %562 = vmatpush1.msra.mxu0 0.0
    %563 = vmatprep.subr.mxu0 0.0
    %564 = vmatpush1.msra.mxu0 0.0
    %565 = vmatprep.subr.mxu0 0.0
    %566 = vmatpush1.msra.mxu0 0.0
    %567 = vmatprep.subr.mxu0 0.0
    %568 = vmatpush1.msra.mxu0 0.0
    %569 = vmatprep.subr.mxu0 0.0
    %570 = vmatpush1.msra.mxu0 0.0
    %571 = vmatprep.subr.mxu0 0.0
    %572 = vmatpush1.msra.mxu0 0.0
    %573 = vmatprep.subr.mxu0 0.0
    %574 = vmatpush1.msra.mxu0 0.0
    %575 = vmatprep.subr.mxu0 0.0
    %576 = vmatpush1.msra.mxu0 0.0
    %577 = vmatprep.subr.mxu0 0.0
    %578 = vmatpush1.msra.mxu0 0.0
    %579 = vmatprep.subr.mxu0 0.0
    %580 = vmatpush1.msra.mxu0 0.0
    %581 = vmatprep.subr.mxu0 0.0
    %582 = vmatpush1.msra.mxu0 0.0
    %583 = vmatprep.subr.mxu0 0.0
    %584 = vmatpush1.msra.mxu0 0.0
    %585 = vmatprep.subr.mxu0 0.0
    %586 = vmatpush1.msra.mxu0 0.0
    %587 = vmatprep.subr.mxu0 0.0
    %588 = vmatpush1.msra.mxu0 0.0
    %589 = vmatprep.subr.mxu0 0.0
    %590 = vmatpush1.msra.mxu0 0.0
    %591 = vmatprep.subr.mxu0 0.0
    %592 = vmatpush1.msra.mxu0 0.0
    %593 = vmatprep.subr.mxu0 0.0
    %594 = vmatpush1.msra.mxu0 0.0
    %595 = vmatprep.subr.mxu0 0.0
    %596 = vmatpush1.msra.mxu0 0.0
    %597 = vmatprep.subr.mxu0 0.0
    %598 = vmatpush1.msra.mxu0 0.0
    %599 = vmatprep.subr.mxu0 0.0
    %600 = vmatpush1.msra.mxu0 0.0
    %601 = vmatprep.subr.mxu0 0.0
    %602 = vmatpush1.msra.mxu0 0.0
    %603 = vmatprep.subr.mxu0 0.0
    %604 = vmatpush1.msra.mxu0 0.0
    %605 = vmatprep.subr.mxu0 0.0
    %606 = vmatpush1.msra.mxu0 0.0
    %607 = vmatprep.subr.mxu0 0.0
    %608 = vmatpush1.msra.mxu0 0.0
    %609 = vmatprep.subr.mxu0 0.0
    %610 = vmatpush1.msra.mxu0 0.0
    %611 = vmatprep.subr.mxu0 0.0
    %612 = vmatpush1.msra.mxu0 0.0
    %613 = vmatprep.subr.mxu0 0.0
    %614 = vmatpush1.msra.mxu0 0.0
    %615 = vmatprep.subr.mxu0 0.0
    %616 = vmatpush1.msra.mxu0 0.0
    %617 = vmatprep.subr.mxu0 0.0
    %618 = vmatpush1.msra.mxu0 0.0
    %619 = vmatprep.subr.mxu0 0.0
    %620 = vmatpush1.msra.mxu0 0.0
    %621 = vmatprep.subr.mxu0 0.0
    %622 = vmatpush1.msra.mxu0 0.0
    %623 = vmatprep.mubr.f32.mxu0 0.0
    %624 = vmatmul.mubr.f32.gmra.mrb[0].mxu0 %v554
    %v625 = vpop.f32.mrb[0].mxu0
    %v626 = vadd.f32 %v551, %v625
    %v627 = vpop.f32.mrb[0].mxu0
    %628 = vdwg.mxu0
    %vm629 = vcmp.gt.f32.partialorder %v626, 0.0
    %v630 = vmul.f32 %v626, 1.442695
    %v631 = vpow.pop %v630
    %v632 = vsub.f32 %v631, 1.0
    %v633 = vsel %vm629, %v626, %v632
    %v634 = vlaneseq
    %v635 = vshrl.u32 %v634, 7
    %v636 = vsub.s32 0, %v635
    %v637 = vrot.slane %v546, %v636
    %v639 = vsel %vm140, %v633, 0
    %641 = vmatprep.subr.mxu0 0.0
    %642 = vmatpush1.msra.mxu0 %v541
    %643 = vmatprep.subr.mxu0 0.0
    %644 = vmatpush1.msra.mxu0 %v542
    %645 = vmatprep.subr.mxu0 0.0
    %646 = vmatpush1.msra.mxu0 %v543
    %647 = vmatprep.subr.mxu0 0.0
    %648 = vmatpush1.msra.mxu0 %v544
    %649 = vmatprep.subr.mxu0 0.0
    %650 = vmatpush1.msra.mxu0 0.0
    %651 = vmatprep.subr.mxu0 0.0
    %652 = vmatpush1.msra.mxu0 0.0
    %653 = vmatprep.subr.mxu0 0.0
    %654 = vmatpush1.msra.mxu0 0.0
    %655 = vmatprep.subr.mxu0 0.0
    %656 = vmatpush1.msra.mxu0 0.0
    %657 = vmatprep.subr.mxu0 0.0
    %658 = vmatpush1.msra.mxu0 0.0
    %659 = vmatprep.subr.mxu0 0.0
    %660 = vmatpush1.msra.mxu0 0.0
    %661 = vmatprep.subr.mxu0 0.0
    %662 = vmatpush1.msra.mxu0 0.0
    %663 = vmatprep.subr.mxu0 0.0
    %664 = vmatpush1.msra.mxu0 0.0
    %665 = vmatprep.subr.mxu0 0.0
    %666 = vmatpush1.msra.mxu0 0.0
    %667 = vmatprep.subr.mxu0 0.0
    %668 = vmatpush1.msra.mxu0 0.0
    %669 = vmatprep.subr.mxu0 0.0
    %670 = vmatpush1.msra.mxu0 0.0
    %671 = vmatprep.subr.mxu0 0.0
    %672 = vmatpush1.msra.mxu0 0.0
    %673 = vmatprep.subr.mxu0 0.0
    %674 = vmatpush1.msra.mxu0 0.0
    %675 = vmatprep.subr.mxu0 0.0
    %676 = vmatpush1.msra.mxu0 0.0
    %677 = vmatprep.subr.mxu0 0.0
    %678 = vmatpush1.msra.mxu0 0.0
    %679 = vmatprep.subr.mxu0 0.0
    %680 = vmatpush1.msra.mxu0 0.0
    %681 = vmatprep.subr.mxu0 0.0
    %682 = vmatpush1.msra.mxu0 0.0
    %683 = vmatprep.subr.mxu0 0.0
    %684 = vmatpush1.msra.mxu0 0.0
    %685 = vmatprep.subr.mxu0 0.0
    %686 = vmatpush1.msra.mxu0 0.0
    %687 = vmatprep.subr.mxu0 0.0
    %688 = vmatpush1.msra.mxu0 0.0
    %689 = vmatprep.subr.mxu0 0.0
    %690 = vmatpush1.msra.mxu0 0.0
    %691 = vmatprep.subr.mxu0 0.0
    %692 = vmatpush1.msra.mxu0 0.0
    %693 = vmatprep.subr.mxu0 0.0
    %694 = vmatpush1.msra.mxu0 0.0
    %695 = vmatprep.subr.mxu0 0.0
    %696 = vmatpush1.msra.mxu0 0.0
    %697 = vmatprep.subr.mxu0 0.0
    %698 = vmatpush1.msra.mxu0 0.0
    %699 = vmatprep.subr.mxu0 0.0
    %700 = vmatpush1.msra.mxu0 0.0
    %701 = vmatprep.subr.mxu0 0.0
    %702 = vmatpush1.msra.mxu0 0.0
    %703 = vmatprep.subr.mxu0 0.0
    %704 = vmatpush1.msra.mxu0 0.0
    %705 = vmatprep.mubr.f32.mxu0 0.0
    %706 = vmatmul.mubr.f32.gmra.mrb[0].mxu0 %v639
    %v707 = vpop.f32.mrb[0].mxu0
    %v708 = vadd.f32 %v637, %v707
    %v709 = vpop.f32.mrb[0].mxu0
    %710 = vdwg.mxu0
    %v711 = vsub.f32 0.0, %v626
    %v712 = vmul.f32 %v711, 1.442695
    %v713 = vpow.pop %v712
    %v714 = vadd.f32 %v713, 1.0
    %v715 = vrcp.pop %v714
    %v716 = vmul.f32 1.0, %v715
    %718 = vrot.lane.b32.xlu0 %v708, 32
    %v719 = vpop.permute.xlu0 %718
    %v721 = vmul.f32 %v716, %v719
    %v722 = vsub.f32 1.0, %v716
    %724 = vrot.lane.b32.xlu0 %v626, 96
    %v725 = vpop.permute.xlu0 %724
    %v727 = vmul.f32 %v722, %v725
    %v728 = vadd.f32 %v721, %v727
    %730 = vrot.lane.b32.xlu0 %v728, 96
    %v731 = vpop.permute.xlu0 %730
    %v733 = vsel %vm490, %v731, 0.0
    %734 = vadd.xlane.f32.xlu0 %v733
    %v735 = vpop.xlane.xlu0 %734
    %v736 = vmul.f32 %v735, %v494
    %v737 = vsub.f32 %v728, %v736
    %v738 = vmul.f32 %v737, %v737
    %740 = vrot.lane.b32.xlu0 %v738, 96
    %v741 = vpop.permute.xlu0 %740
    %v743 = vsel %vm490, %v741, 0.0
    %744 = vadd.xlane.f32.xlu0 %v743
    %v745 = vpop.xlane.xlu0 %744
    %v746 = vmul.f32 %v745, %v494
    %v747 = vadd.f32 %v746, 1e-05
    %v748 = vrsqrt.pop %v747
    %v749 = vmul.f32 %v737, %v748
    %v750 = vlaneseq
    %v751 = vshrl.u32 %v750, 7
    %v752 = vsub.s32 1, %v751
    %v753 = vrot.slane %v546, %v752
    %755 = vrot.lane.b32.xlu0 %v753, 32
    %v756 = vpop.permute.xlu0 %755
    %v758 = vmul.f32 %v749, %v756
    %v759 = vlaneseq
    %v760 = vshrl.u32 %v759, 7
    %v761 = vsub.s32 2, %v760
    %v762 = vrot.slane %v546, %v761
    %764 = vrot.lane.b32.xlu0 %v762, 32
    %v765 = vpop.permute.xlu0 %764
    %v767 = vadd.f32 %v758, %v765
    %768 = vset.pattern.permute.xlu0 33
    %769 = vperm.xlu0 %768, %v293
    %v770 = vpop.permute.xlu0 %769
    %v772 = vmul.f32 %v770, %v767
    %v773 = vadd.f32 %v533, %v772
    %775 = vrot.lane.b32.xlu0 %v773, 96
    %v776 = vpop.permute.xlu0 %775
    %778 = vst.msk [vmem:[#allocation2] sm:$0x3] %vm490, %v776
    // Predicated region
    $region42: #{tpu_custom_call.1} parent=1 // pred_check
      _
    $region43: #{tpu_custom_call.1} parent=1 // pred_check_branch
      %780 = sbr.rel (0) target = $region45
    $region44: #{tpu_custom_call.1} parent=1 // pred_region
      %s782 = ssub.s32 32, 32
      %783 = vsyncadd [#allocation3], %s782
      %s785 = sshll.u32 [#allocation2], 4
      %s786 = int_to_ptr.vmem [resolvable:$true] %s785
      %788 = dma.vmem_to_hbm [thread:$0]  %s786, 32, %s10, [#allocation3]
    $region45: #{tpu_custom_call.1} parent=1 // pred_fallthru
      _
    // Predicated region
    $region46: #{tpu_custom_call.1} parent=1 // pred_check
      _
    $region47: #{tpu_custom_call.1} parent=1 // pred_check_branch
      %790 = sbr.rel (0) target = $region49
    $region48: #{tpu_custom_call.1} parent=1 // pred_region
      %s792 = ssub.s32 32, 32
      %793 = vsyncadd [#allocation5], %s792
      %s795 = sshll.u32 [#allocation4], 4
      %s796 = int_to_ptr.vmem [resolvable:$true] %s795
      %798 = dma.vmem_to_hbm [thread:$0]  %s796, 32, %s11, [#allocation5]
    $region49: #{tpu_custom_call.1} parent=1 // pred_fallthru
      _
    // Predicated region
    $region50: #{tpu_custom_call.1} parent=1 // pred_check
      _
    $region51: #{tpu_custom_call.1} parent=1 // pred_check_branch
      %800 = sbr.rel (0) target = $region53
    $region52: #{tpu_custom_call.1} parent=1 // pred_region
      %801 = dma.done [#allocation3], 32
    $region53: #{tpu_custom_call.1} parent=1 // pred_fallthru
      _
    // Predicated region
    $region54: #{tpu_custom_call.1} parent=1 // pred_check
      _
    $region55: #{tpu_custom_call.1} parent=1 // pred_check_branch
      %803 = sbr.rel (0) target = $region57
    $region56: #{tpu_custom_call.1} parent=1 // pred_region
      %804 = dma.done [#allocation5], 32
    $region57: #{tpu_custom_call.1} parent=1 // pred_fallthru
      _
    %805 = vsyncpa [#allocation3], 1
    %806 = vsyncpa [#allocation5], 1

</llo_original>
